<compile_context>
chip_gen: v5e
topology: v5e:2x2
jax: 0.10.0
libtpu: 0.0.40
codegen_flags: <defaults>
</compile_context>

<pallas_src>
import functools

import jax
import jax.numpy as jnp
from jax import lax
from jax.experimental import pallas as pl
from jax.experimental.pallas import tpu as pltpu


def _round_up(x, m):
    return (x + m - 1) // m * m


# ---------------------------------------------------------------------------
# depthwise 3x3 (dilation d) on a row-major flattened, zero-padded image
# ---------------------------------------------------------------------------
def _dwconv_flat(x_ref, wdw_ref, *, s_cols, wp, d):
    """x_ref: (Cin, Sin) flattened padded image (+ zero tail), Sin >= s_cols + 2d*(Wp+1).
    wdw_ref: (Cin, 9) depthwise taps, tap index = ki*3 + kj.
    Returns (Cin, s_cols) f32 where flat position s = h*Wp + w'."""
    cin = x_ref.shape[0]
    slab = x_ref[...]                      # one VMEM load, reused by all 9 taps
    wdw = wdw_ref[...]
    acc = jnp.zeros((cin, s_cols), jnp.float32)
    for ki in range(3):
        for kj in range(3):
            off = ki * d * wp + kj * d     # constant flat offset of this tap
            k = ki * 3 + kj
            tap = slab[:, off:off + s_cols]
            acc = acc + tap * wdw[:, k:k + 1]
    # TODO(synk): form taps with pltpu.roll (XLU slot) instead of lane-shifted slices if the
    # VALU becomes the binding slot at production sizes.
    return acc


# ---------------------------------------------------------------------------
# pointwise 1x1 conv: (Cout, Cin) @ (Cin, S) -> (Cout, S)
# ---------------------------------------------------------------------------
def _pointwise(t, wpw_ref):
    cin, s_cols = t.shape
    wpw = wpw_ref[...]
    cout = wpw.shape[0]
    if cin <= 16:
        # K is tiny: Cin broadcast-MACs on the VPU beat an almost-empty MXU pass.
        y = jnp.zeros((cout, s_cols), jnp.float32)
        for ci in range(cin):
            y = y + wpw[:, ci:ci + 1] * t[ci:ci + 1, :]
        return y
    # Wide layers: MXU matmul, bf16 operands, f32 accumulation.
    return jnp.dot(wpw.astype(jnp.bfloat16), t.astype(jnp.bfloat16),
                   preferred_element_type=jnp.float32)


# ---------------------------------------------------------------------------
# Pass 1: per-image per-channel sum / sumsq of the depthwise output (BN1 stats)
# ---------------------------------------------------------------------------
def _dw_stats_kernel(x_ref, wdw_ref, mask_ref, st_ref, *, s_cols, wp, d):
    t = _dwconv_flat(x_ref, wdw_ref, s_cols=s_cols, wp=wp, d=d)
    tm = t * mask_ref[...]                                   # drop pad columns / tail
    st_ref[:, 0:1] = jnp.sum(tm, axis=1, keepdims=True)
    st_ref[:, 1:2] = jnp.sum(tm * t, axis=1, keepdims=True)


# ---------------------------------------------------------------------------
# Pass 2: dw + BN1 + ReLU + 1x1 -> per-image BN2 stats (no intermediate stored)
# ---------------------------------------------------------------------------
def _dw_pw_stats_kernel(x_ref, wdw_ref, s1_ref, b1_ref, wpw_ref, mask_ref, st_ref,
                        *, s_cols, wp, d):
    t = _dwconv_flat(x_ref, wdw_ref, s_cols=s_cols, wp=wp, d=d)
    t = jnp.maximum(t * s1_ref[...] + b1_ref[...], 0.0)      # BN1 (folded) + ReLU
    y = _pointwise(t, wpw_ref)
    ym = y * mask_ref[...]
    st_ref[:, 0:1] = jnp.sum(ym, axis=1, keepdims=True)
    st_ref[:, 1:2] = jnp.sum(ym * y, axis=1, keepdims=True)


# ---------------------------------------------------------------------------
# Pass 3: recompute dw + BN1 + ReLU + 1x1, apply BN2 (+ ReLU), lane-dense store
# ---------------------------------------------------------------------------
def _dw_pw_out_kernel(x_ref, wdw_ref, s1_ref, b1_ref, wpw_ref, s2_ref, b2_ref, o_ref,
                      *, s_cols, wp, d, relu):
    t = _dwconv_flat(x_ref, wdw_ref, s_cols=s_cols, wp=wp, d=d)
    t = jnp.maximum(t * s1_ref[...] + b1_ref[...], 0.0)      # BN1 + ReLU
    y = _pointwise(t, wpw_ref)
    o = y * s2_ref[...] + b2_ref[...]                         # BN2 (folded)
    if relu:
        o = jnp.maximum(o, 0.0)
    o_ref[...] = o.astype(o_ref.dtype)


# ---------------------------------------------------------------------------
# Wrapper: layout glue + BN finalization between the passes
# ---------------------------------------------------------------------------
def dsconv3x3_forward(x_nchw, w_dw, gamma1, beta1, w_pw, gamma2, beta2,
                      *, stride=1, dilation=1, relu=True, eps=1e-5):
    # TODO(synk): stride != 1 needs strided output indexing; not implemented.
    assert stride == 1
    d = int(dilation)
    n, cin, h, w = x_nchw.shape
    cout = w_pw.shape[0]
    assert w_dw.shape == (cin, 1, 3, 3)
    assert w_pw.shape[:2] == (cout, cin)
    f32 = jnp.float32

    hp, wp = h + 2 * d, w + 2 * d
    s_out = h * wp                                   # width-extended output positions / image
    s_cols = _round_up(s_out, 128)                   # lane-dense compute width
    sin = s_cols + _round_up(2 * d * (wp + 1), 128)  # slab length (>= hp*wp + 2d)

    # ---- glue: zero-pad spatially, flatten rows, zero tail pad (NCHW kept, no transpose)
    xp = jnp.pad(x_nchw.astype(f32), ((0, 0), (0, 0), (d, d), (d, d)))
    xf = jnp.pad(xp.reshape(n, cin, hp * wp), ((0, 0), (0, 0), (0, sin - hp * wp)))

    wdw = w_dw[:, 0].reshape(cin, 9).astype(f32)     # (Cin, 9), tap index = ki*3 + kj
    wpw = w_pw[:, :, 0, 0].astype(f32)               # (Cout, Cin), no 128 padding

    lane = jnp.arange(s_cols, dtype=jnp.int32)
    mask = ((lane < s_out) & ((lane % wp) < w)).astype(f32).reshape(1, s_cols)

    # BlockSpecs: one whole image per grid step; per-image partial stats; "parallel" N axis.
    x_spec = pl.BlockSpec((None, cin, sin), lambda i: (i, 0, 0))
    wdw_spec = pl.BlockSpec((cin, 9), lambda i: (0, 0))
    mask_spec = pl.BlockSpec((1, s_cols), lambda i: (0, 0))
    colc_spec = pl.BlockSpec((cin, 1), lambda i: (0, 0))
    wpw_spec = pl.BlockSpec((cout, cin), lambda i: (0, 0))
    colo_spec = pl.BlockSpec((cout, 1), lambda i: (0, 0))

    # VMEM budget from buffer sizes, clamped so a v5e/v6e tile cannot blow v7x's 64 MiB.
    bytes_per_step = 4 * (2 * cin * sin + 2 * cout * s_cols
                          + 8 * (cin + cout) * s_cols
                          + cin * 9 + s_cols + 2 * cin + cout * cin + 2 * cout)
    vmem_limit = int(min(48 * 2**20, max(32 * 2**20, 2 * bytes_per_step)))
    cparams = pltpu.CompilerParams(dimension_semantics=("parallel",),
                                   vmem_limit_bytes=vmem_limit)
    # TODO(synk): images too large for the per-step VMEM budget need an extra H-tile grid
    # axis with a row halo; whole-image tiles are used here (small-shape case).

    cnt = float(n * h * w)
    dw_flops = 2 * 9 * cin * s_cols * n
    pw_flops = 2 * cin * cout * s_cols * n

    # ---- pass 1: per-image BN1 batch-stat partials of the depthwise output ----
    stats1 = pl.pallas_call(
        functools.partial(_dw_stats_kernel, s_cols=s_cols, wp=wp, d=d),
        grid=(n,),
        in_specs=[x_spec, wdw_spec, mask_spec],
        out_specs=pl.BlockSpec((None, cin, 2), lambda i: (i, 0, 0)),
        out_shape=jax.ShapeDtypeStruct((n, cin, 2), f32),
        compiler_params=cparams,
        cost_estimate=pl.CostEstimate(flops=dw_flops, transcendentals=0,
                                      bytes_accessed=int(xf.size * 4)),
    )(xf, wdw, mask)

    st1 = jnp.sum(stats1, axis=0)                    # (Cin, 2)
    mean1 = st1[:, 0] / cnt
    # TODO(synk): sum/sumsq variance is cancellation-prone for large-mean activations;
    # acceptable at these scales (matches reference within tolerance).
    var1 = jnp.maximum(st1[:, 1] / cnt - mean1 * mean1, 0.0)
    inv1 = lax.rsqrt(var1 + eps)
    g1 = gamma1.astype(f32)
    scale1 = (g1 * inv1).reshape(cin, 1)
    shift1 = (beta1.astype(f32) - mean1 * g1 * inv1).reshape(cin, 1)

    # ---- pass 2: dw + BN1 + ReLU + 1x1, per-image BN2 batch-stat partials ----
    stats2 = pl.pallas_call(
        functools.partial(_dw_pw_stats_kernel, s_cols=s_cols, wp=wp, d=d),
        grid=(n,),
        in_specs=[x_spec, wdw_spec, colc_spec, colc_spec, wpw_spec, mask_spec],
        out_specs=pl.BlockSpec((None, cout, 2), lambda i: (i, 0, 0)),
        out_shape=jax.ShapeDtypeStruct((n, cout, 2), f32),
        compiler_params=cparams,
        cost_estimate=pl.CostEstimate(flops=dw_flops + pw_flops, transcendentals=0,
                                      bytes_accessed=int(xf.size * 4)),
    )(xf, wdw, scale1, shift1, wpw, mask)

    st2 = jnp.sum(stats2, axis=0)                    # (Cout, 2)
    mean2 = st2[:, 0] / cnt
    var2 = jnp.maximum(st2[:, 1] / cnt - mean2 * mean2, 0.0)
    inv2 = lax.rsqrt(var2 + eps)
    g2 = gamma2.astype(f32)
    scale2 = (g2 * inv2).reshape(cout, 1)
    shift2 = (beta2.astype(f32) - mean2 * g2 * inv2).reshape(cout, 1)

    # ---- pass 3: recompute dw + BN1 + ReLU + 1x1, apply BN2 (+ ReLU), store output ----
    out_flat = pl.pallas_call(
        functools.partial(_dw_pw_out_kernel, s_cols=s_cols, wp=wp, d=d, relu=relu),
        grid=(n,),
        in_specs=[x_spec, wdw_spec, colc_spec, colc_spec, wpw_spec, colo_spec, colo_spec],
        out_specs=pl.BlockSpec((None, cout, s_cols), lambda i: (i, 0, 0)),
        out_shape=jax.ShapeDtypeStruct((n, cout, s_cols), f32),
        compiler_params=cparams,
        cost_estimate=pl.CostEstimate(flops=dw_flops + pw_flops, transcendentals=0,
                                      bytes_accessed=int((xf.size + n * cout * s_cols) * 4)),
    )(xf, wdw, scale1, shift1, wpw, scale2, shift2)

    # ---- glue: drop the pad columns / tail; output is already NCHW ----
    out = out_flat[:, :, :s_out].reshape(n, cout, h, wp)[:, :, :, :w]
    return out
    # TODO(synk): PyTorch train-mode BN also updates running_mean/var buffers; that side
    # effect does not change the returned tensor and is not reproduced here.


# ---------------------------------------------------------------------------
# pure-JAX reference mirroring the PyTorch module
# ---------------------------------------------------------------------------
def _bn_relu_ref(y, gamma, beta, eps, relu):
    m = jnp.mean(y, axis=(0, 2, 3), keepdims=True)
    v = jnp.mean(jnp.square(y - m), axis=(0, 2, 3), keepdims=True)
    out = (y - m) * lax.rsqrt(v + eps) * gamma.reshape(1, -1, 1, 1) + beta.reshape(1, -1, 1, 1)
    return jnp.maximum(out, 0.0) if relu else out


def _reference(x, w_dw, g1, b1, w_pw, g2, b2, *, dilation=1, eps=1e-5, relu=True):
    cin = x.shape[1]
    y = lax.conv_general_dilated(
        x.astype(jnp.float32), w_dw.astype(jnp.float32),
        window_strides=(1, 1), padding=((dilation, dilation), (dilation, dilation)),
        rhs_dilation=(dilation, dilation),
        dimension_numbers=("NCHW", "OIHW", "NCHW"), feature_group_count=cin)
    y = _bn_relu_ref(y, g1, b1, eps, True)
    z = lax.conv_general_dilated(
        y, w_pw.astype(jnp.float32), window_strides=(1, 1), padding=((0, 0), (0, 0)),
        dimension_numbers=("NCHW", "OIHW", "NCHW"))
    return _bn_relu_ref(z, g2, b2, eps, relu)


if __name__ == "__main__":
    # DSConv3x3(in_channel=4, out_channel=8), stride=1, dilation=1, relu=True
    N, CIN, COUT, H, W = 2, 4, 8, 16, 16
    key = jax.random.PRNGKey(0)
    kx, k1, k2 = jax.random.split(key, 3)

    x = jax.random.normal(kx, (N, CIN, H, W), dtype=jnp.float32)

    # PyTorch-style deterministic init: conv uniform(-1/sqrt(fan_in),..), BN gamma=1 beta=0
    b_dw = 1.0 / (1 * 3 * 3) ** 0.5
    w_dw = jax.random.uniform(k1, (CIN, 1, 3, 3), minval=-b_dw, maxval=b_dw, dtype=jnp.float32)
    b_pw = 1.0 / (CIN * 1 * 1) ** 0.5
    w_pw = jax.random.uniform(k2, (COUT, CIN, 1, 1), minval=-b_pw, maxval=b_pw, dtype=jnp.float32)
    gamma1 = jnp.ones((CIN,), jnp.float32)
    beta1 = jnp.zeros((CIN,), jnp.float32)
    gamma2 = jnp.ones((COUT,), jnp.float32)
    beta2 = jnp.zeros((COUT,), jnp.float32)

    fwd = jax.jit(dsconv3x3_forward)
    out = fwd(x, w_dw, gamma1, beta1, w_pw, gamma2, beta2)
    out = jax.block_until_ready(out)

    ref = _reference(x, w_dw, gamma1, beta1, w_pw, gamma2, beta2)
    assert out.shape == (N, COUT, H, W), out.shape
    max_err = float(jnp.max(jnp.abs(out - ref)))
    assert jnp.allclose(out, ref, rtol=2e-3, atol=2e-3), max_err
    print("KERNEL_OK")
</pallas_src>

<mosaic_0001>
module attributes {stable_mosaic.version = 11 : i64} {
  func.func @_dw_stats_kernel(%arg0: i32, %arg1: memref<1x4x512xf32, #tpu.memory_space<vmem>>, %arg2: memref<4x9xf32, #tpu.memory_space<vmem>>, %arg3: memref<1x384xf32, #tpu.memory_space<vmem>>, %arg4: memref<1x4x2xf32, #tpu.memory_space<vmem>>) attributes {dimension_semantics = [#tpu.dimension_semantics<parallel>], iteration_bounds = array<i64: 2>, scalar_prefetch = 0 : i64, scratch_operands = 0 : i64, tpu.core_type = #tpu.core_type<tc>, window_params = [{transform_indices = @transform_0, window_bounds = array<i64: 1, 4, 512>}, {pipeline_mode = #tpu.pipeline_mode<synchronous>, transform_indices = @transform_1, window_bounds = array<i64: 4, 9>}, {pipeline_mode = #tpu.pipeline_mode<synchronous>, transform_indices = @transform_2, window_bounds = array<i64: 1, 384>}, {transform_indices = @transform_3, window_bounds = array<i64: 1, 4, 2>}]} {
    %c0 = arith.constant 0 : index
    %c0_0 = arith.constant 0 : index
    %c0_1 = arith.constant 0 : index
    %0 = vector.load %arg1[%c0, %c0_0, %c0_1] : memref<1x4x512xf32, #tpu.memory_space<vmem>>, vector<1x4x512xf32>
    %1 = vector.shape_cast %0 : vector<1x4x512xf32> to vector<4x512xf32>
    %c0_2 = arith.constant 0 : index
    %c0_3 = arith.constant 0 : index
    %2 = vector.load %arg2[%c0_2, %c0_3] : memref<4x9xf32, #tpu.memory_space<vmem>>, vector<4x9xf32>
    %cst = arith.constant 0.000000e+00 : f32
    %3 = vector.broadcast %cst : f32 to vector<4x384xf32>
    %4 = vector.extract_strided_slice %1 {offsets = [0, 0], sizes = [4, 384], strides = [1, 1]} : vector<4x512xf32> to vector<4x384xf32>
    %5 = vector.extract_strided_slice %2 {offsets = [0, 0], sizes = [4, 1], strides = [1, 1]} : vector<4x9xf32> to vector<4x1xf32>
    %6 = vector.broadcast %5 : vector<4x1xf32> to vector<4x384xf32>
    %7 = arith.mulf %4, %6 : vector<4x384xf32>
    %8 = arith.addf %3, %7 : vector<4x384xf32>
    %9 = vector.extract_strided_slice %1 {offsets = [0, 1], sizes = [4, 384], strides = [1, 1]} : vector<4x512xf32> to vector<4x384xf32>
    %10 = vector.extract_strided_slice %2 {offsets = [0, 1], sizes = [4, 1], strides = [1, 1]} : vector<4x9xf32> to vector<4x1xf32>
    %11 = vector.broadcast %10 : vector<4x1xf32> to vector<4x384xf32>
    %12 = arith.mulf %9, %11 : vector<4x384xf32>
    %13 = arith.addf %8, %12 : vector<4x384xf32>
    %14 = vector.extract_strided_slice %1 {offsets = [0, 2], sizes = [4, 384], strides = [1, 1]} : vector<4x512xf32> to vector<4x384xf32>
    %15 = vector.extract_strided_slice %2 {offsets = [0, 2], sizes = [4, 1], strides = [1, 1]} : vector<4x9xf32> to vector<4x1xf32>
    %16 = vector.broadcast %15 : vector<4x1xf32> to vector<4x384xf32>
    %17 = arith.mulf %14, %16 : vector<4x384xf32>
    %18 = arith.addf %13, %17 : vector<4x384xf32>
    %19 = vector.extract_strided_slice %1 {offsets = [0, 18], sizes = [4, 384], strides = [1, 1]} : vector<4x512xf32> to vector<4x384xf32>
    %20 = vector.extract_strided_slice %2 {offsets = [0, 3], sizes = [4, 1], strides = [1, 1]} : vector<4x9xf32> to vector<4x1xf32>
    %21 = vector.broadcast %20 : vector<4x1xf32> to vector<4x384xf32>
    %22 = arith.mulf %19, %21 : vector<4x384xf32>
    %23 = arith.addf %18, %22 : vector<4x384xf32>
    %24 = vector.extract_strided_slice %1 {offsets = [0, 19], sizes = [4, 384], strides = [1, 1]} : vector<4x512xf32> to vector<4x384xf32>
    %25 = vector.extract_strided_slice %2 {offsets = [0, 4], sizes = [4, 1], strides = [1, 1]} : vector<4x9xf32> to vector<4x1xf32>
    %26 = vector.broadcast %25 : vector<4x1xf32> to vector<4x384xf32>
    %27 = arith.mulf %24, %26 : vector<4x384xf32>
    %28 = arith.addf %23, %27 : vector<4x384xf32>
    %29 = vector.extract_strided_slice %1 {offsets = [0, 20], sizes = [4, 384], strides = [1, 1]} : vector<4x512xf32> to vector<4x384xf32>
    %30 = vector.extract_strided_slice %2 {offsets = [0, 5], sizes = [4, 1], strides = [1, 1]} : vector<4x9xf32> to vector<4x1xf32>
    %31 = vector.broadcast %30 : vector<4x1xf32> to vector<4x384xf32>
    %32 = arith.mulf %29, %31 : vector<4x384xf32>
    %33 = arith.addf %28, %32 : vector<4x384xf32>
    %34 = vector.extract_strided_slice %1 {offsets = [0, 36], sizes = [4, 384], strides = [1, 1]} : vector<4x512xf32> to vector<4x384xf32>
    %35 = vector.extract_strided_slice %2 {offsets = [0, 6], sizes = [4, 1], strides = [1, 1]} : vector<4x9xf32> to vector<4x1xf32>
    %36 = vector.broadcast %35 : vector<4x1xf32> to vector<4x384xf32>
    %37 = arith.mulf %34, %36 : vector<4x384xf32>
    %38 = arith.addf %33, %37 : vector<4x384xf32>
    %39 = vector.extract_strided_slice %1 {offsets = [0, 37], sizes = [4, 384], strides = [1, 1]} : vector<4x512xf32> to vector<4x384xf32>
    %40 = vector.extract_strided_slice %2 {offsets = [0, 7], sizes = [4, 1], strides = [1, 1]} : vector<4x9xf32> to vector<4x1xf32>
    %41 = vector.broadcast %40 : vector<4x1xf32> to vector<4x384xf32>
    %42 = arith.mulf %39, %41 : vector<4x384xf32>
    %43 = arith.addf %38, %42 : vector<4x384xf32>
    %44 = vector.extract_strided_slice %1 {offsets = [0, 38], sizes = [4, 384], strides = [1, 1]} : vector<4x512xf32> to vector<4x384xf32>
    %45 = vector.extract_strided_slice %2 {offsets = [0, 8], sizes = [4, 1], strides = [1, 1]} : vector<4x9xf32> to vector<4x1xf32>
    %46 = vector.broadcast %45 : vector<4x1xf32> to vector<4x384xf32>
    %47 = arith.mulf %44, %46 : vector<4x384xf32>
    %48 = arith.addf %43, %47 : vector<4x384xf32>
    %c0_4 = arith.constant 0 : index
    %c0_5 = arith.constant 0 : index
    %49 = vector.load %arg3[%c0_4, %c0_5] : memref<1x384xf32, #tpu.memory_space<vmem>>, vector<1x384xf32>
    %50 = vector.broadcast %49 : vector<1x384xf32> to vector<4x384xf32>
    %51 = arith.mulf %48, %50 : vector<4x384xf32>
    %cst_6 = arith.constant dense<0.000000e+00> : vector<4xf32>
    %52 = vector.multi_reduction <add>, %51, %cst_6 [1] : vector<4x384xf32> to vector<4xf32>
    %53 = vector.shape_cast %52 : vector<4xf32> to vector<4x1xf32>
    %c0_7 = arith.constant 0 : index
    %c0_8 = arith.constant 0 : index
    %c0_9 = arith.constant 0 : index
    %54 = vector.load %arg4[%c0_7, %c0_8, %c0_9] : memref<1x4x2xf32, #tpu.memory_space<vmem>>, vector<1x4x1xf32>
    %55 = vector.shape_cast %54 : vector<1x4x1xf32> to vector<4x1xf32>
    %56 = vector.shape_cast %53 : vector<4x1xf32> to vector<1x4x1xf32>
    tpu.vector_store %arg4[%c0_7, %c0_8, %c0_9], %56 {strides = array<i32>} : memref<1x4x2xf32, #tpu.memory_space<vmem>>, vector<1x4x1xf32>,
    %57 = arith.mulf %51, %48 : vector<4x384xf32>
    %cst_10 = arith.constant dense<0.000000e+00> : vector<4xf32>
    %58 = vector.multi_reduction <add>, %57, %cst_10 [1] : vector<4x384xf32> to vector<4xf32>
    %59 = vector.shape_cast %58 : vector<4xf32> to vector<4x1xf32>
    %c0_11 = arith.constant 0 : index
    %c0_12 = arith.constant 0 : index
    %c1 = arith.constant 1 : index
    %60 = vector.load %arg4[%c0_11, %c0_12, %c1] : memref<1x4x2xf32, #tpu.memory_space<vmem>>, vector<1x4x1xf32>
    %61 = vector.shape_cast %60 : vector<1x4x1xf32> to vector<4x1xf32>
    %62 = vector.shape_cast %59 : vector<4x1xf32> to vector<1x4x1xf32>
    tpu.vector_store %arg4[%c0_11, %c0_12, %c1], %62 {strides = array<i32>} : memref<1x4x2xf32, #tpu.memory_space<vmem>>, vector<1x4x1xf32>,
    return
  }
  func.func @transform_0(%arg0: i32) -> (i32, i32, i32) {
    %c0_i32 = arith.constant 0 : i32
    %c0_i32_0 = arith.constant 0 : i32
    %c0_i32_1 = arith.constant 0 : i32
    return %arg0, %c0_i32, %c0_i32_0 : i32, i32, i32
  }
  func.func @transform_1(%arg0: i32) -> (i32, i32) {
    %c0_i32 = arith.constant 0 : i32
    %c0_i32_0 = arith.constant 0 : i32
    %c0_i32_1 = arith.constant 0 : i32
    return %c0_i32, %c0_i32_0 : i32, i32
  }
  func.func @transform_2(%arg0: i32) -> (i32, i32) {
    %c0_i32 = arith.constant 0 : i32
    %c0_i32_0 = arith.constant 0 : i32
    %c0_i32_1 = arith.constant 0 : i32
    return %c0_i32, %c0_i32_0 : i32, i32
  }
  func.func @transform_3(%arg0: i32) -> (i32, i32, i32) {
    %c0_i32 = arith.constant 0 : i32
    %c0_i32_0 = arith.constant 0 : i32
    %c0_i32_1 = arith.constant 0 : i32
    return %arg0, %c0_i32, %c0_i32_0 : i32, i32, i32
  }
}

module attributes {stable_mosaic.version = 11 : i64} {
  func.func @_dw_pw_stats_kernel(%arg0: i32, %arg1: memref<1x4x512xf32, #tpu.memory_space<vmem>>, %arg2: memref<4x9xf32, #tpu.memory_space<vmem>>, %arg3: memref<4x1xf32, #tpu.memory_space<vmem>>, %arg4: memref<4x1xf32, #tpu.memory_space<vmem>>, %arg5: memref<8x4xf32, #tpu.memory_space<vmem>>, %arg6: memref<1x384xf32, #tpu.memory_space<vmem>>, %arg7: memref<1x8x2xf32, #tpu.memory_space<vmem>>) attributes {dimension_semantics = [#tpu.dimension_semantics<parallel>], iteration_bounds = array<i64: 2>, scalar_prefetch = 0 : i64, scratch_operands = 0 : i64, tpu.core_type = #tpu.core_type<tc>, window_params = [{transform_indices = @transform_0, window_bounds = array<i64: 1, 4, 512>}, {pipeline_mode = #tpu.pipeline_mode<synchronous>, transform_indices = @transform_1, window_bounds = array<i64: 4, 9>}, {pipeline_mode = #tpu.pipeline_mode<synchronous>, transform_indices = @transform_2, window_bounds = array<i64: 4, 1>}, {pipeline_mode = #tpu.pipeline_mode<synchronous>, transform_indices = @transform_3, window_bounds = array<i64: 4, 1>}, {pipeline_mode = #tpu.pipeline_mode<synchronous>, transform_indices = @transform_4, window_bounds = array<i64: 8, 4>}, {pipeline_mode = #tpu.pipeline_mode<synchronous>, transform_indices = @transform_5, window_bounds = array<i64: 1, 384>}, {transform_indices = @transform_6, window_bounds = array<i64: 1, 8, 2>}]} {
    %c0 = arith.constant 0 : index
    %c0_0 = arith.constant 0 : index
    %c0_1 = arith.constant 0 : index
    %0 = vector.load %arg1[%c0, %c0_0, %c0_1] : memref<1x4x512xf32, #tpu.memory_space<vmem>>, vector<1x4x512xf32>
    %1 = vector.shape_cast %0 : vector<1x4x512xf32> to vector<4x512xf32>
    %c0_2 = arith.constant 0 : index
    %c0_3 = arith.constant 0 : index
    %2 = vector.load %arg2[%c0_2, %c0_3] : memref<4x9xf32, #tpu.memory_space<vmem>>, vector<4x9xf32>
    %cst = arith.constant 0.000000e+00 : f32
    %3 = vector.broadcast %cst : f32 to vector<4x384xf32>
    %4 = vector.extract_strided_slice %1 {offsets = [0, 0], sizes = [4, 384], strides = [1, 1]} : vector<4x512xf32> to vector<4x384xf32>
    %5 = vector.extract_strided_slice %2 {offsets = [0, 0], sizes = [4, 1], strides = [1, 1]} : vector<4x9xf32> to vector<4x1xf32>
    %6 = vector.broadcast %5 : vector<4x1xf32> to vector<4x384xf32>
    %7 = arith.mulf %4, %6 : vector<4x384xf32>
    %8 = arith.addf %3, %7 : vector<4x384xf32>
    %9 = vector.extract_strided_slice %1 {offsets = [0, 1], sizes = [4, 384], strides = [1, 1]} : vector<4x512xf32> to vector<4x384xf32>
    %10 = vector.extract_strided_slice %2 {offsets = [0, 1], sizes = [4, 1], strides = [1, 1]} : vector<4x9xf32> to vector<4x1xf32>
    %11 = vector.broadcast %10 : vector<4x1xf32> to vector<4x384xf32>
    %12 = arith.mulf %9, %11 : vector<4x384xf32>
    %13 = arith.addf %8, %12 : vector<4x384xf32>
    %14 = vector.extract_strided_slice %1 {offsets = [0, 2], sizes = [4, 384], strides = [1, 1]} : vector<4x512xf32> to vector<4x384xf32>
    %15 = vector.extract_strided_slice %2 {offsets = [0, 2], sizes = [4, 1], strides = [1, 1]} : vector<4x9xf32> to vector<4x1xf32>
    %16 = vector.broadcast %15 : vector<4x1xf32> to vector<4x384xf32>
    %17 = arith.mulf %14, %16 : vector<4x384xf32>
    %18 = arith.addf %13, %17 : vector<4x384xf32>
    %19 = vector.extract_strided_slice %1 {offsets = [0, 18], sizes = [4, 384], strides = [1, 1]} : vector<4x512xf32> to vector<4x384xf32>
    %20 = vector.extract_strided_slice %2 {offsets = [0, 3], sizes = [4, 1], strides = [1, 1]} : vector<4x9xf32> to vector<4x1xf32>
    %21 = vector.broadcast %20 : vector<4x1xf32> to vector<4x384xf32>
    %22 = arith.mulf %19, %21 : vector<4x384xf32>
    %23 = arith.addf %18, %22 : vector<4x384xf32>
    %24 = vector.extract_strided_slice %1 {offsets = [0, 19], sizes = [4, 384], strides = [1, 1]} : vector<4x512xf32> to vector<4x384xf32>
    %25 = vector.extract_strided_slice %2 {offsets = [0, 4], sizes = [4, 1], strides = [1, 1]} : vector<4x9xf32> to vector<4x1xf32>
    %26 = vector.broadcast %25 : vector<4x1xf32> to vector<4x384xf32>
    %27 = arith.mulf %24, %26 : vector<4x384xf32>
    %28 = arith.addf %23, %27 : vector<4x384xf32>
    %29 = vector.extract_strided_slice %1 {offsets = [0, 20], sizes = [4, 384], strides = [1, 1]} : vector<4x512xf32> to vector<4x384xf32>
    %30 = vector.extract_strided_slice %2 {offsets = [0, 5], sizes = [4, 1], strides = [1, 1]} : vector<4x9xf32> to vector<4x1xf32>
    %31 = vector.broadcast %30 : vector<4x1xf32> to vector<4x384xf32>
    %32 = arith.mulf %29, %31 : vector<4x384xf32>
    %33 = arith.addf %28, %32 : vector<4x384xf32>
    %34 = vector.extract_strided_slice %1 {offsets = [0, 36], sizes = [4, 384], strides = [1, 1]} : vector<4x512xf32> to vector<4x384xf32>
    %35 = vector.extract_strided_slice %2 {offsets = [0, 6], sizes = [4, 1], strides = [1, 1]} : vector<4x9xf32> to vector<4x1xf32>
    %36 = vector.broadcast %35 : vector<4x1xf32> to vector<4x384xf32>
    %37 = arith.mulf %34, %36 : vector<4x384xf32>
    %38 = arith.addf %33, %37 : vector<4x384xf32>
    %39 = vector.extract_strided_slice %1 {offsets = [0, 37], sizes = [4, 384], strides = [1, 1]} : vector<4x512xf32> to vector<4x384xf32>
    %40 = vector.extract_strided_slice %2 {offsets = [0, 7], sizes = [4, 1], strides = [1, 1]} : vector<4x9xf32> to vector<4x1xf32>
    %41 = vector.broadcast %40 : vector<4x1xf32> to vector<4x384xf32>
    %42 = arith.mulf %39, %41 : vector<4x384xf32>
    %43 = arith.addf %38, %42 : vector<4x384xf32>
    %44 = vector.extract_strided_slice %1 {offsets = [0, 38], sizes = [4, 384], strides = [1, 1]} : vector<4x512xf32> to vector<4x384xf32>
    %45 = vector.extract_strided_slice %2 {offsets = [0, 8], sizes = [4, 1], strides = [1, 1]} : vector<4x9xf32> to vector<4x1xf32>
    %46 = vector.broadcast %45 : vector<4x1xf32> to vector<4x384xf32>
    %47 = arith.mulf %44, %46 : vector<4x384xf32>
    %48 = arith.addf %43, %47 : vector<4x384xf32>
    %c0_4 = arith.constant 0 : index
    %c0_5 = arith.constant 0 : index
    %49 = vector.load %arg3[%c0_4, %c0_5] : memref<4x1xf32, #tpu.memory_space<vmem>>, vector<4x1xf32>
    %50 = vector.broadcast %49 : vector<4x1xf32> to vector<4x384xf32>
    %51 = arith.mulf %48, %50 : vector<4x384xf32>
    %c0_6 = arith.constant 0 : index
    %c0_7 = arith.constant 0 : index
    %52 = vector.load %arg4[%c0_6, %c0_7] : memref<4x1xf32, #tpu.memory_space<vmem>>, vector<4x1xf32>
    %53 = vector.broadcast %52 : vector<4x1xf32> to vector<4x384xf32>
    %54 = arith.addf %51, %53 : vector<4x384xf32>
    %cst_8 = arith.constant 0.000000e+00 : f32
    %55 = vector.broadcast %cst_8 : f32 to vector<4x384xf32>
    %56 = arith.maximumf %54, %55 : vector<4x384xf32>
    %c0_9 = arith.constant 0 : index
    %c0_10 = arith.constant 0 : index
    %57 = vector.load %arg5[%c0_9, %c0_10] : memref<8x4xf32, #tpu.memory_space<vmem>>, vector<8x4xf32>
    %cst_11 = arith.constant 0.000000e+00 : f32
    %58 = vector.broadcast %cst_11 : f32 to vector<8x384xf32>
    %59 = vector.extract_strided_slice %57 {offsets = [0, 0], sizes = [8, 1], strides = [1, 1]} : vector<8x4xf32> to vector<8x1xf32>
    %60 = vector.extract_strided_slice %56 {offsets = [0, 0], sizes = [1, 384], strides = [1, 1]} : vector<4x384xf32> to vector<1x384xf32>
    %61 = vector.broadcast %59 : vector<8x1xf32> to vector<8x384xf32>
    %62 = vector.broadcast %60 : vector<1x384xf32> to vector<8x384xf32>
    %63 = arith.mulf %61, %62 : vector<8x384xf32>
    %64 = arith.addf %58, %63 : vector<8x384xf32>
    %65 = vector.extract_strided_slice %57 {offsets = [0, 1], sizes = [8, 1], strides = [1, 1]} : vector<8x4xf32> to vector<8x1xf32>
    %66 = vector.extract_strided_slice %56 {offsets = [1, 0], sizes = [1, 384], strides = [1, 1]} : vector<4x384xf32> to vector<1x384xf32>
    %67 = vector.broadcast %65 : vector<8x1xf32> to vector<8x384xf32>
    %68 = vector.broadcast %66 : vector<1x384xf32> to vector<8x384xf32>
    %69 = arith.mulf %67, %68 : vector<8x384xf32>
    %70 = arith.addf %64, %69 : vector<8x384xf32>
    %71 = vector.extract_strided_slice %57 {offsets = [0, 2], sizes = [8, 1], strides = [1, 1]} : vector<8x4xf32> to vector<8x1xf32>
    %72 = vector.extract_strided_slice %56 {offsets = [2, 0], sizes = [1, 384], strides = [1, 1]} : vector<4x384xf32> to vector<1x384xf32>
    %73 = vector.broadcast %71 : vector<8x1xf32> to vector<8x384xf32>
    %74 = vector.broadcast %72 : vector<1x384xf32> to vector<8x384xf32>
    %75 = arith.mulf %73, %74 : vector<8x384xf32>
    %76 = arith.addf %70, %75 : vector<8x384xf32>
    %77 = vector.extract_strided_slice %57 {offsets = [0, 3], sizes = [8, 1], strides = [1, 1]} : vector<8x4xf32> to vector<8x1xf32>
    %78 = vector.extract_strided_slice %56 {offsets = [3, 0], sizes = [1, 384], strides = [1, 1]} : vector<4x384xf32> to vector<1x384xf32>
    %79 = vector.broadcast %77 : vector<8x1xf32> to vector<8x384xf32>
    %80 = vector.broadcast %78 : vector<1x384xf32> to vector<8x384xf32>
    %81 = arith.mulf %79, %80 : vector<8x384xf32>
    %82 = arith.addf %76, %81 : vector<8x384xf32>
    %c0_12 = arith.constant 0 : index
    %c0_13 = arith.constant 0 : index
    %83 = vector.load %arg6[%c0_12, %c0_13] : memref<1x384xf32, #tpu.memory_space<vmem>>, vector<1x384xf32>
    %84 = vector.broadcast %83 : vector<1x384xf32> to vector<8x384xf32>
    %85 = arith.mulf %82, %84 : vector<8x384xf32>
    %cst_14 = arith.constant dense<0.000000e+00> : vector<8xf32>
    %86 = vector.multi_reduction <add>, %85, %cst_14 [1] : vector<8x384xf32> to vector<8xf32>
    %87 = vector.shape_cast %86 : vector<8xf32> to vector<8x1xf32>
    %c0_15 = arith.constant 0 : index
    %c0_16 = arith.constant 0 : index
    %c0_17 = arith.constant 0 : index
    %88 = vector.load %arg7[%c0_15, %c0_16, %c0_17] : memref<1x8x2xf32, #tpu.memory_space<vmem>>, vector<1x8x1xf32>
    %89 = vector.shape_cast %88 : vector<1x8x1xf32> to vector<8x1xf32>
    %90 = vector.shape_cast %87 : vector<8x1xf32> to vector<1x8x1xf32>
    tpu.vector_store %arg7[%c0_15, %c0_16, %c0_17], %90 {strides = array<i32>} : memref<1x8x2xf32, #tpu.memory_space<vmem>>, vector<1x8x1xf32>,
    %91 = arith.mulf %85, %82 : vector<8x384xf32>
    %cst_18 = arith.constant dense<0.000000e+00> : vector<8xf32>
    %92 = vector.multi_reduction <add>, %91, %cst_18 [1] : vector<8x384xf32> to vector<8xf32>
    %93 = vector.shape_cast %92 : vector<8xf32> to vector<8x1xf32>
    %c0_19 = arith.constant 0 : index
    %c0_20 = arith.constant 0 : index
    %c1 = arith.constant 1 : index
    %94 = vector.load %arg7[%c0_19, %c0_20, %c1] : memref<1x8x2xf32, #tpu.memory_space<vmem>>, vector<1x8x1xf32>
    %95 = vector.shape_cast %94 : vector<1x8x1xf32> to vector<8x1xf32>
    %96 = vector.shape_cast %93 : vector<8x1xf32> to vector<1x8x1xf32>
    tpu.vector_store %arg7[%c0_19, %c0_20, %c1], %96 {strides = array<i32>} : memref<1x8x2xf32, #tpu.memory_space<vmem>>, vector<1x8x1xf32>,
    return
  }
  func.func @transform_0(%arg0: i32) -> (i32, i32, i32) {
    %c0_i32 = arith.constant 0 : i32
    %c0_i32_0 = arith.constant 0 : i32
    %c0_i32_1 = arith.constant 0 : i32
    return %arg0, %c0_i32, %c0_i32_0 : i32, i32, i32
  }
  func.func @transform_1(%arg0: i32) -> (i32, i32) {
    %c0_i32 = arith.constant 0 : i32
    %c0_i32_0 = arith.constant 0 : i32
    %c0_i32_1 = arith.constant 0 : i32
    return %c0_i32, %c0_i32_0 : i32, i32
  }
  func.func @transform_2(%arg0: i32) -> (i32, i32) {
    %c0_i32 = arith.constant 0 : i32
    %c0_i32_0 = arith.constant 0 : i32
    %c0_i32_1 = arith.constant 0 : i32
    return %c0_i32, %c0_i32_0 : i32, i32
  }
  func.func @transform_3(%arg0: i32) -> (i32, i32) {
    %c0_i32 = arith.constant 0 : i32
    %c0_i32_0 = arith.constant 0 : i32
    %c0_i32_1 = arith.constant 0 : i32
    return %c0_i32, %c0_i32_0 : i32, i32
  }
  func.func @transform_4(%arg0: i32) -> (i32, i32) {
    %c0_i32 = arith.constant 0 : i32
    %c0_i32_0 = arith.constant 0 : i32
    %c0_i32_1 = arith.constant 0 : i32
    return %c0_i32, %c0_i32_0 : i32, i32
  }
  func.func @transform_5(%arg0: i32) -> (i32, i32) {
    %c0_i32 = arith.constant 0 : i32
    %c0_i32_0 = arith.constant 0 : i32
    %c0_i32_1 = arith.constant 0 : i32
    return %c0_i32, %c0_i32_0 : i32, i32
  }
  func.func @transform_6(%arg0: i32) -> (i32, i32, i32) {
    %c0_i32 = arith.constant 0 : i32
    %c0_i32_0 = arith.constant 0 : i32
    %c0_i32_1 = arith.constant 0 : i32
    return %arg0, %c0_i32, %c0_i32_0 : i32, i32, i32
  }
}

module attributes {stable_mosaic.version = 11 : i64} {
  func.func @_dw_pw_out_kernel(%arg0: i32, %arg1: memref<1x4x512xf32, #tpu.memory_space<vmem>>, %arg2: memref<4x9xf32, #tpu.memory_space<vmem>>, %arg3: memref<4x1xf32, #tpu.memory_space<vmem>>, %arg4: memref<4x1xf32, #tpu.memory_space<vmem>>, %arg5: memref<8x4xf32, #tpu.memory_space<vmem>>, %arg6: memref<8x1xf32, #tpu.memory_space<vmem>>, %arg7: memref<8x1xf32, #tpu.memory_space<vmem>>, %arg8: memref<1x8x384xf32, #tpu.memory_space<vmem>>) attributes {dimension_semantics = [#tpu.dimension_semantics<parallel>], iteration_bounds = array<i64: 2>, scalar_prefetch = 0 : i64, scratch_operands = 0 : i64, tpu.core_type = #tpu.core_type<tc>, window_params = [{transform_indices = @transform_0, window_bounds = array<i64: 1, 4, 512>}, {pipeline_mode = #tpu.pipeline_mode<synchronous>, transform_indices = @transform_1, window_bounds = array<i64: 4, 9>}, {pipeline_mode = #tpu.pipeline_mode<synchronous>, transform_indices = @transform_2, window_bounds = array<i64: 4, 1>}, {pipeline_mode = #tpu.pipeline_mode<synchronous>, transform_indices = @transform_3, window_bounds = array<i64: 4, 1>}, {pipeline_mode = #tpu.pipeline_mode<synchronous>, transform_indices = @transform_4, window_bounds = array<i64: 8, 4>}, {pipeline_mode = #tpu.pipeline_mode<synchronous>, transform_indices = @transform_5, window_bounds = array<i64: 8, 1>}, {pipeline_mode = #tpu.pipeline_mode<synchronous>, transform_indices = @transform_6, window_bounds = array<i64: 8, 1>}, {transform_indices = @transform_7, window_bounds = array<i64: 1, 8, 384>}]} {
    %c0 = arith.constant 0 : index
    %c0_0 = arith.constant 0 : index
    %c0_1 = arith.constant 0 : index
    %0 = vector.load %arg1[%c0, %c0_0, %c0_1] : memref<1x4x512xf32, #tpu.memory_space<vmem>>, vector<1x4x512xf32>
    %1 = vector.shape_cast %0 : vector<1x4x512xf32> to vector<4x512xf32>
    %c0_2 = arith.constant 0 : index
    %c0_3 = arith.constant 0 : index
    %2 = vector.load %arg2[%c0_2, %c0_3] : memref<4x9xf32, #tpu.memory_space<vmem>>, vector<4x9xf32>
    %cst = arith.constant 0.000000e+00 : f32
    %3 = vector.broadcast %cst : f32 to vector<4x384xf32>
    %4 = vector.extract_strided_slice %1 {offsets = [0, 0], sizes = [4, 384], strides = [1, 1]} : vector<4x512xf32> to vector<4x384xf32>
    %5 = vector.extract_strided_slice %2 {offsets = [0, 0], sizes = [4, 1], strides = [1, 1]} : vector<4x9xf32> to vector<4x1xf32>
    %6 = vector.broadcast %5 : vector<4x1xf32> to vector<4x384xf32>
    %7 = arith.mulf %4, %6 : vector<4x384xf32>
    %8 = arith.addf %3, %7 : vector<4x384xf32>
    %9 = vector.extract_strided_slice %1 {offsets = [0, 1], sizes = [4, 384], strides = [1, 1]} : vector<4x512xf32> to vector<4x384xf32>
    %10 = vector.extract_strided_slice %2 {offsets = [0, 1], sizes = [4, 1], strides = [1, 1]} : vector<4x9xf32> to vector<4x1xf32>
    %11 = vector.broadcast %10 : vector<4x1xf32> to vector<4x384xf32>
    %12 = arith.mulf %9, %11 : vector<4x384xf32>
    %13 = arith.addf %8, %12 : vector<4x384xf32>
    %14 = vector.extract_strided_slice %1 {offsets = [0, 2], sizes = [4, 384], strides = [1, 1]} : vector<4x512xf32> to vector<4x384xf32>
    %15 = vector.extract_strided_slice %2 {offsets = [0, 2], sizes = [4, 1], strides = [1, 1]} : vector<4x9xf32> to vector<4x1xf32>
    %16 = vector.broadcast %15 : vector<4x1xf32> to vector<4x384xf32>
    %17 = arith.mulf %14, %16 : vector<4x384xf32>
    %18 = arith.addf %13, %17 : vector<4x384xf32>
    %19 = vector.extract_strided_slice %1 {offsets = [0, 18], sizes = [4, 384], strides = [1, 1]} : vector<4x512xf32> to vector<4x384xf32>
    %20 = vector.extract_strided_slice %2 {offsets = [0, 3], sizes = [4, 1], strides = [1, 1]} : vector<4x9xf32> to vector<4x1xf32>
    %21 = vector.broadcast %20 : vector<4x1xf32> to vector<4x384xf32>
    %22 = arith.mulf %19, %21 : vector<4x384xf32>
    %23 = arith.addf %18, %22 : vector<4x384xf32>
    %24 = vector.extract_strided_slice %1 {offsets = [0, 19], sizes = [4, 384], strides = [1, 1]} : vector<4x512xf32> to vector<4x384xf32>
    %25 = vector.extract_strided_slice %2 {offsets = [0, 4], sizes = [4, 1], strides = [1, 1]} : vector<4x9xf32> to vector<4x1xf32>
    %26 = vector.broadcast %25 : vector<4x1xf32> to vector<4x384xf32>
    %27 = arith.mulf %24, %26 : vector<4x384xf32>
    %28 = arith.addf %23, %27 : vector<4x384xf32>
    %29 = vector.extract_strided_slice %1 {offsets = [0, 20], sizes = [4, 384], strides = [1, 1]} : vector<4x512xf32> to vector<4x384xf32>
    %30 = vector.extract_strided_slice %2 {offsets = [0, 5], sizes = [4, 1], strides = [1, 1]} : vector<4x9xf32> to vector<4x1xf32>
    %31 = vector.broadcast %30 : vector<4x1xf32> to vector<4x384xf32>
    %32 = arith.mulf %29, %31 : vector<4x384xf32>
    %33 = arith.addf %28, %32 : vector<4x384xf32>
    %34 = vector.extract_strided_slice %1 {offsets = [0, 36], sizes = [4, 384], strides = [1, 1]} : vector<4x512xf32> to vector<4x384xf32>
    %35 = vector.extract_strided_slice %2 {offsets = [0, 6], sizes = [4, 1], strides = [1, 1]} : vector<4x9xf32> to vector<4x1xf32>
    %36 = vector.broadcast %35 : vector<4x1xf32> to vector<4x384xf32>
    %37 = arith.mulf %34, %36 : vector<4x384xf32>
    %38 = arith.addf %33, %37 : vector<4x384xf32>
    %39 = vector.extract_strided_slice %1 {offsets = [0, 37], sizes = [4, 384], strides = [1, 1]} : vector<4x512xf32> to vector<4x384xf32>
    %40 = vector.extract_strided_slice %2 {offsets = [0, 7], sizes = [4, 1], strides = [1, 1]} : vector<4x9xf32> to vector<4x1xf32>
    %41 = vector.broadcast %40 : vector<4x1xf32> to vector<4x384xf32>
    %42 = arith.mulf %39, %41 : vector<4x384xf32>
    %43 = arith.addf %38, %42 : vector<4x384xf32>
    %44 = vector.extract_strided_slice %1 {offsets = [0, 38], sizes = [4, 384], strides = [1, 1]} : vector<4x512xf32> to vector<4x384xf32>
    %45 = vector.extract_strided_slice %2 {offsets = [0, 8], sizes = [4, 1], strides = [1, 1]} : vector<4x9xf32> to vector<4x1xf32>
    %46 = vector.broadcast %45 : vector<4x1xf32> to vector<4x384xf32>
    %47 = arith.mulf %44, %46 : vector<4x384xf32>
    %48 = arith.addf %43, %47 : vector<4x384xf32>
    %c0_4 = arith.constant 0 : index
    %c0_5 = arith.constant 0 : index
    %49 = vector.load %arg3[%c0_4, %c0_5] : memref<4x1xf32, #tpu.memory_space<vmem>>, vector<4x1xf32>
    %50 = vector.broadcast %49 : vector<4x1xf32> to vector<4x384xf32>
    %51 = arith.mulf %48, %50 : vector<4x384xf32>
    %c0_6 = arith.constant 0 : index
    %c0_7 = arith.constant 0 : index
    %52 = vector.load %arg4[%c0_6, %c0_7] : memref<4x1xf32, #tpu.memory_space<vmem>>, vector<4x1xf32>
    %53 = vector.broadcast %52 : vector<4x1xf32> to vector<4x384xf32>
    %54 = arith.addf %51, %53 : vector<4x384xf32>
    %cst_8 = arith.constant 0.000000e+00 : f32
    %55 = vector.broadcast %cst_8 : f32 to vector<4x384xf32>
    %56 = arith.maximumf %54, %55 : vector<4x384xf32>
    %c0_9 = arith.constant 0 : index
    %c0_10 = arith.constant 0 : index
    %57 = vector.load %arg5[%c0_9, %c0_10] : memref<8x4xf32, #tpu.memory_space<vmem>>, vector<8x4xf32>
    %cst_11 = arith.constant 0.000000e+00 : f32
    %58 = vector.broadcast %cst_11 : f32 to vector<8x384xf32>
    %59 = vector.extract_strided_slice %57 {offsets = [0, 0], sizes = [8, 1], strides = [1, 1]} : vector<8x4xf32> to vector<8x1xf32>
    %60 = vector.extract_strided_slice %56 {offsets = [0, 0], sizes = [1, 384], strides = [1, 1]} : vector<4x384xf32> to vector<1x384xf32>
    %61 = vector.broadcast %59 : vector<8x1xf32> to vector<8x384xf32>
    %62 = vector.broadcast %60 : vector<1x384xf32> to vector<8x384xf32>
    %63 = arith.mulf %61, %62 : vector<8x384xf32>
    %64 = arith.addf %58, %63 : vector<8x384xf32>
    %65 = vector.extract_strided_slice %57 {offsets = [0, 1], sizes = [8, 1], strides = [1, 1]} : vector<8x4xf32> to vector<8x1xf32>
    %66 = vector.extract_strided_slice %56 {offsets = [1, 0], sizes = [1, 384], strides = [1, 1]} : vector<4x384xf32> to vector<1x384xf32>
    %67 = vector.broadcast %65 : vector<8x1xf32> to vector<8x384xf32>
    %68 = vector.broadcast %66 : vector<1x384xf32> to vector<8x384xf32>
    %69 = arith.mulf %67, %68 : vector<8x384xf32>
    %70 = arith.addf %64, %69 : vector<8x384xf32>
    %71 = vector.extract_strided_slice %57 {offsets = [0, 2], sizes = [8, 1], strides = [1, 1]} : vector<8x4xf32> to vector<8x1xf32>
    %72 = vector.extract_strided_slice %56 {offsets = [2, 0], sizes = [1, 384], strides = [1, 1]} : vector<4x384xf32> to vector<1x384xf32>
    %73 = vector.broadcast %71 : vector<8x1xf32> to vector<8x384xf32>
    %74 = vector.broadcast %72 : vector<1x384xf32> to vector<8x384xf32>
    %75 = arith.mulf %73, %74 : vector<8x384xf32>
    %76 = arith.addf %70, %75 : vector<8x384xf32>
    %77 = vector.extract_strided_slice %57 {offsets = [0, 3], sizes = [8, 1], strides = [1, 1]} : vector<8x4xf32> to vector<8x1xf32>
    %78 = vector.extract_strided_slice %56 {offsets = [3, 0], sizes = [1, 384], strides = [1, 1]} : vector<4x384xf32> to vector<1x384xf32>
    %79 = vector.broadcast %77 : vector<8x1xf32> to vector<8x384xf32>
    %80 = vector.broadcast %78 : vector<1x384xf32> to vector<8x384xf32>
    %81 = arith.mulf %79, %80 : vector<8x384xf32>
    %82 = arith.addf %76, %81 : vector<8x384xf32>
    %c0_12 = arith.constant 0 : index
    %c0_13 = arith.constant 0 : index
    %83 = vector.load %arg6[%c0_12, %c0_13] : memref<8x1xf32, #tpu.memory_space<vmem>>, vector<8x1xf32>
    %84 = vector.broadcast %83 : vector<8x1xf32> to vector<8x384xf32>
    %85 = arith.mulf %82, %84 : vector<8x384xf32>
    %c0_14 = arith.constant 0 : index
    %c0_15 = arith.constant 0 : index
    %86 = vector.load %arg7[%c0_14, %c0_15] : memref<8x1xf32, #tpu.memory_space<vmem>>, vector<8x1xf32>
    %87 = vector.broadcast %86 : vector<8x1xf32> to vector<8x384xf32>
    %88 = arith.addf %85, %87 : vector<8x384xf32>
    %cst_16 = arith.constant 0.000000e+00 : f32
    %89 = vector.broadcast %cst_16 : f32 to vector<8x384xf32>
    %90 = arith.maximumf %88, %89 : vector<8x384xf32>
    %c0_17 = arith.constant 0 : index
    %c0_18 = arith.constant 0 : index
    %c0_19 = arith.constant 0 : index
    %91 = vector.load %arg8[%c0_17, %c0_18, %c0_19] : memref<1x8x384xf32, #tpu.memory_space<vmem>>, vector<1x8x384xf32>
    %92 = vector.shape_cast %91 : vector<1x8x384xf32> to vector<8x384xf32>
    %93 = vector.shape_cast %90 : vector<8x384xf32> to vector<1x8x384xf32>
    tpu.vector_store %arg8[%c0_17, %c0_18, %c0_19], %93 {strides = array<i32>} : memref<1x8x384xf32, #tpu.memory_space<vmem>>, vector<1x8x384xf32>,
    return
  }
  func.func @transform_0(%arg0: i32) -> (i32, i32, i32) {
    %c0_i32 = arith.constant 0 : i32
    %c0_i32_0 = arith.constant 0 : i32
    %c0_i32_1 = arith.constant 0 : i32
    return %arg0, %c0_i32, %c0_i32_0 : i32, i32, i32
  }
  func.func @transform_1(%arg0: i32) -> (i32, i32) {
    %c0_i32 = arith.constant 0 : i32
    %c0_i32_0 = arith.constant 0 : i32
    %c0_i32_1 = arith.constant 0 : i32
    return %c0_i32, %c0_i32_0 : i32, i32
  }
  func.func @transform_2(%arg0: i32) -> (i32, i32) {
    %c0_i32 = arith.constant 0 : i32
    %c0_i32_0 = arith.constant 0 : i32
    %c0_i32_1 = arith.constant 0 : i32
    return %c0_i32, %c0_i32_0 : i32, i32
  }
  func.func @transform_3(%arg0: i32) -> (i32, i32) {
    %c0_i32 = arith.constant 0 : i32
    %c0_i32_0 = arith.constant 0 : i32
    %c0_i32_1 = arith.constant 0 : i32
    return %c0_i32, %c0_i32_0 : i32, i32
  }
  func.func @transform_4(%arg0: i32) -> (i32, i32) {
    %c0_i32 = arith.constant 0 : i32
    %c0_i32_0 = arith.constant 0 : i32
    %c0_i32_1 = arith.constant 0 : i32
    return %c0_i32, %c0_i32_0 : i32, i32
  }
  func.func @transform_5(%arg0: i32) -> (i32, i32) {
    %c0_i32 = arith.constant 0 : i32
    %c0_i32_0 = arith.constant 0 : i32
    %c0_i32_1 = arith.constant 0 : i32
    return %c0_i32, %c0_i32_0 : i32, i32
  }
  func.func @transform_6(%arg0: i32) -> (i32, i32) {
    %c0_i32 = arith.constant 0 : i32
    %c0_i32_0 = arith.constant 0 : i32
    %c0_i32_1 = arith.constant 0 : i32
    return %c0_i32, %c0_i32_0 : i32, i32
  }
  func.func @transform_7(%arg0: i32) -> (i32, i32, i32) {
    %c0_i32 = arith.constant 0 : i32
    %c0_i32_0 = arith.constant 0 : i32
    %c0_i32_1 = arith.constant 0 : i32
    return %arg0, %c0_i32, %c0_i32_0 : i32, i32, i32
  }
}

</mosaic_0001>

<llo_original>
// kernel: dsconv3x3_forward.4
$region0: #{dsconv3x3_forward.4}
  #allocation0 [shape = 'u32[]', space=smem, size = 0x4, offset = 0x4, fixed_abs, tag = 'smem constant byte address 0x4 - core index']
  #allocation1 [shape = 'u32[72,128]{1,0:T(1,128)}', space=vmem, size = 0x9000, scoped, tag = 'internal scratch']
  %s0 = inlined_call_operand.vmem [shape: f32[2,4,512], index: 0, kind: input, shape index: {}]
  %s1 = inlined_call_operand.vmem [shape: f32[4,9], index: 1, kind: input, shape index: {}]
  %s2 = inlined_call_operand.vmem [shape: f32[4,1], index: 2, kind: input, shape index: {}]
  %s3 = inlined_call_operand.vmem [shape: f32[4,1], index: 3, kind: input, shape index: {}]
  %s4 = inlined_call_operand.vmem [shape: f32[8,4], index: 4, kind: input, shape index: {}]
  %s5 = inlined_call_operand.vmem [shape: f32[1,384], index: 5, kind: input, shape index: {}]
  %s6 = inlined_call_operand.vmem [shape: f32[2,8,2], index: 6, kind: output, shape index: {}]
  %s7 = sld [smem:[#allocation0]]
  $region57: #{dsconv3x3_forward.4} parent=0
    _
  %s9 = ssub.s32 1, %s7
  %s10 = scalar_select 0, %s9, %s7
  loop: start=0, step=1, limit=4
  $region2: #{dsconv3x3_forward.4} parent=0 // loop_pre_header
    _
  $region3: #{dsconv3x3_forward.4} parent=0 // loop_header
    %s12 = sphi 0, %s16
    %p13 = scmp.ge.s32.totalorder %s12, 4
    %s22 = sphi 0, %s24
    %s25 = sphi 0, %s22
    %s26 = sphi 0, %s25
    %s42 = sphi 0, %s26
    %s46 = sphi 0, %s46
    %s48 = sphi 0, %s46
    %s49 = sphi 0, %s48
    %s63 = sphi 0, %s49
    %s67 = sphi 0, %s67
    %s69 = sphi 0, %s67
    %s70 = sphi 0, %s69
    %s84 = sphi 0, %s70
    %s88 = sphi 0, %s88
    %s90 = sphi 0, %s88
    %s91 = sphi 0, %s90
    %s105 = sphi 0, %s91
    %s109 = sphi 0, %s109
    %s111 = sphi 0, %s109
    %s112 = sphi 0, %s111
    %s126 = sphi 0, %s112
    %s130 = sphi 0, %s130
    %s132 = sphi 0, %s130
    %s133 = sphi 0, %s132
    %s147 = sphi 0, %s133
    %s153 = sphi 0, %s155
    %s156 = sphi 0, %s153
    %s157 = sphi 0, %s156
    %s173 = sphi 0, %s157
  $region4: #{dsconv3x3_forward.4} parent=0 // loop_header_branch
    %15 = sbr.rel (%p13) target = $region8
  $region5: #{dsconv3x3_forward.4} parent=0 // loop_body
    %s17 = ssub.s32 %s12, 1
    %s18 = ssub.s32 %s12, 2
    %s19 = sadd.s32 %s12, 1
    %s20 = ssub.s32 %s12, %s19
    %p21 = scmp.eq.s32.totalorder %s20, 0
    %s23 = sadd.s32 %s22, 1
    %s24 = scalar_select %p21, %s22, %s23
    %p27 = pneg %p21
    %p28 = scmp.eq.s32.totalorder %s12, 1
    %p29 = por %p27, %p28
    %p30 = scmp.ne.s32.totalorder %s22, %s25
    %p31 = scmp.eq.s32.totalorder %s12, 0
    %p32 = por %p30, %p31
    %p33 = scmp.ne.s32.totalorder %s22, %s25
    %p34 = scmp.eq.s32.totalorder %s17, 1
    %p35 = por %p33, %p34
    %p36 = scmp.ne.s32.totalorder %s25, %s26
    %p37 = scmp.eq.s32.totalorder %s17, 0
    %p38 = por %p36, %p37
    %p39 = scmp.ne.s32.totalorder %s25, %s26
    %p40 = scmp.eq.s32.totalorder %s18, 1
    %p41 = por %p39, %p40
    %p43 = scmp.ne.s32.totalorder %s26, %s42
    %p44 = scmp.eq.s32.totalorder %s18, 0
    %p45 = por %p43, %p44
    %s47 = sadd.s32 %s46, 1
    %p50 = scmp.eq.s32.totalorder %s12, 1
    %p51 = scmp.ne.s32.totalorder %s46, %s48
    %p52 = scmp.eq.s32.totalorder %s12, 0
    %p53 = por %p51, %p52
    %p54 = scmp.ne.s32.totalorder %s46, %s48
    %p55 = scmp.eq.s32.totalorder %s17, 1
    %p56 = por %p54, %p55
    %p57 = scmp.ne.s32.totalorder %s48, %s49
    %p58 = scmp.eq.s32.totalorder %s17, 0
    %p59 = por %p57, %p58
    %p60 = scmp.ne.s32.totalorder %s48, %s49
    %p61 = scmp.eq.s32.totalorder %s18, 1
    %p62 = por %p60, %p61
    %p64 = scmp.ne.s32.totalorder %s49, %s63
    %p65 = scmp.eq.s32.totalorder %s18, 0
    %p66 = por %p64, %p65
    %s68 = sadd.s32 %s67, 1
    %p71 = scmp.eq.s32.totalorder %s12, 1
    %p72 = scmp.ne.s32.totalorder %s67, %s69
    %p73 = scmp.eq.s32.totalorder %s12, 0
    %p74 = por %p72, %p73
    %p75 = scmp.ne.s32.totalorder %s67, %s69
    %p76 = scmp.eq.s32.totalorder %s17, 1
    %p77 = por %p75, %p76
    %p78 = scmp.ne.s32.totalorder %s69, %s70
    %p79 = scmp.eq.s32.totalorder %s17, 0
    %p80 = por %p78, %p79
    %p81 = scmp.ne.s32.totalorder %s69, %s70
    %p82 = scmp.eq.s32.totalorder %s18, 1
    %p83 = por %p81, %p82
    %p85 = scmp.ne.s32.totalorder %s70, %s84
    %p86 = scmp.eq.s32.totalorder %s18, 0
    %p87 = por %p85, %p86
    %s89 = sadd.s32 %s88, 1
    %p92 = scmp.eq.s32.totalorder %s12, 1
    %p93 = scmp.ne.s32.totalorder %s88, %s90
    %p94 = scmp.eq.s32.totalorder %s12, 0
    %p95 = por %p93, %p94
    %p96 = scmp.ne.s32.totalorder %s88, %s90
    %p97 = scmp.eq.s32.totalorder %s17, 1
    %p98 = por %p96, %p97
    %p99 = scmp.ne.s32.totalorder %s90, %s91
    %p100 = scmp.eq.s32.totalorder %s17, 0
    %p101 = por %p99, %p100
    %p102 = scmp.ne.s32.totalorder %s90, %s91
    %p103 = scmp.eq.s32.totalorder %s18, 1
    %p104 = por %p102, %p103
    %p106 = scmp.ne.s32.totalorder %s91, %s105
    %p107 = scmp.eq.s32.totalorder %s18, 0
    %p108 = por %p106, %p107
    %s110 = sadd.s32 %s109, 1
    %p113 = scmp.eq.s32.totalorder %s12, 1
    %p114 = scmp.ne.s32.totalorder %s109, %s111
    %p115 = scmp.eq.s32.totalorder %s12, 0
    %p116 = por %p114, %p115
    %p117 = scmp.ne.s32.totalorder %s109, %s111
    %p118 = scmp.eq.s32.totalorder %s17, 1
    %p119 = por %p117, %p118
    %p120 = scmp.ne.s32.totalorder %s111, %s112
    %p121 = scmp.eq.s32.totalorder %s17, 0
    %p122 = por %p120, %p121
    %p123 = scmp.ne.s32.totalorder %s111, %s112
    %p124 = scmp.eq.s32.totalorder %s18, 1
    %p125 = por %p123, %p124
    %p127 = scmp.ne.s32.totalorder %s112, %s126
    %p128 = scmp.eq.s32.totalorder %s18, 0
    %p129 = por %p127, %p128
    %s131 = sadd.s32 %s130, 1
    %p134 = scmp.eq.s32.totalorder %s12, 1
    %p135 = scmp.ne.s32.totalorder %s130, %s132
    %p136 = scmp.eq.s32.totalorder %s12, 0
    %p137 = por %p135, %p136
    %p138 = scmp.ne.s32.totalorder %s130, %s132
    %p139 = scmp.eq.s32.totalorder %s17, 1
    %p140 = por %p138, %p139
    %p141 = scmp.ne.s32.totalorder %s132, %s133
    %p142 = scmp.eq.s32.totalorder %s17, 0
    %p143 = por %p141, %p142
    %p144 = scmp.ne.s32.totalorder %s132, %s133
    %p145 = scmp.eq.s32.totalorder %s18, 1
    %p146 = por %p144, %p145
    %p148 = scmp.ne.s32.totalorder %s133, %s147
    %p149 = scmp.eq.s32.totalorder %s18, 0
    %p150 = por %p148, %p149
    %s151 = ssub.s32 %s12, %s19
    %p152 = scmp.eq.s32.totalorder %s151, 0
    %s154 = sadd.s32 %s153, 1
    %s155 = scalar_select %p152, %s153, %s154
    %p158 = pneg %p152
    %p159 = scmp.eq.s32.totalorder %s12, 1
    %p160 = por %p158, %p159
    %p161 = scmp.ne.s32.totalorder %s153, %s156
    %p162 = scmp.eq.s32.totalorder %s12, 0
    %p163 = por %p161, %p162
    %p164 = scmp.ne.s32.totalorder %s153, %s156
    %p165 = scmp.eq.s32.totalorder %s17, 1
    %p166 = por %p164, %p165
    %p167 = scmp.ne.s32.totalorder %s156, %s157
    %p168 = scmp.eq.s32.totalorder %s17, 0
    %p169 = por %p167, %p168
    %p170 = scmp.ne.s32.totalorder %s156, %s157
    %p171 = scmp.eq.s32.totalorder %s18, 1
    %p172 = por %p170, %p171
    %p174 = scmp.ne.s32.totalorder %s157, %s173
    %p175 = scmp.eq.s32.totalorder %s18, 0
    %p176 = por %p174, %p175
    %p177 = scmp.le.s32.totalorder 1, %s12
    %p178 = scmp.lt.s32.totalorder %s12, 3
    %p179 = pnand %p177, %p178
    %p180 = pneg %p179
    // Predicated region
    $region9: #{dsconv3x3_forward.4} parent=5 // pred_check
      _
    $region10: #{dsconv3x3_forward.4} parent=5 // pred_check_branch
      %182 = sbr.rel (%p179) target = $region12
    $region11: #{dsconv3x3_forward.4} parent=5 // pred_region
      %s183 = ssub.s32 %s12, 1
      // Predicated region
      $region13: #{dsconv3x3_forward.4} parent=11 // pred_check
        %p184 = pneg %p59
      $region14: #{dsconv3x3_forward.4} parent=11 // pred_check_branch
        %186 = sbr.rel (%p184) target = $region16
      $region15: #{dsconv3x3_forward.4} parent=11 // pred_region
        _
      $region16: #{dsconv3x3_forward.4} parent=11 // pred_fallthru
        _
      // Predicated region
      $region17: #{dsconv3x3_forward.4} parent=11 // pred_check
        %p187 = pneg %p80
      $region18: #{dsconv3x3_forward.4} parent=11 // pred_check_branch
        %189 = sbr.rel (%p187) target = $region20
      $region19: #{dsconv3x3_forward.4} parent=11 // pred_region
        _
      $region20: #{dsconv3x3_forward.4} parent=11 // pred_fallthru
        _
      // Predicated region
      $region21: #{dsconv3x3_forward.4} parent=11 // pred_check
        %p190 = pneg %p101
      $region22: #{dsconv3x3_forward.4} parent=11 // pred_check_branch
        %192 = sbr.rel (%p190) target = $region24
      $region23: #{dsconv3x3_forward.4} parent=11 // pred_region
        _
      $region24: #{dsconv3x3_forward.4} parent=11 // pred_fallthru
        _
      // Predicated region
      $region25: #{dsconv3x3_forward.4} parent=11 // pred_check
        %p193 = pneg %p122
      $region26: #{dsconv3x3_forward.4} parent=11 // pred_check_branch
        %195 = sbr.rel (%p193) target = $region28
      $region27: #{dsconv3x3_forward.4} parent=11 // pred_region
        _
      $region28: #{dsconv3x3_forward.4} parent=11 // pred_fallthru
        _
      // Predicated region
      $region29: #{dsconv3x3_forward.4} parent=11 // pred_check
        %p196 = pneg %p143
      $region30: #{dsconv3x3_forward.4} parent=11 // pred_check_branch
        %198 = sbr.rel (%p196) target = $region32
      $region31: #{dsconv3x3_forward.4} parent=11 // pred_region
        _
      $region32: #{dsconv3x3_forward.4} parent=11 // pred_fallthru
        _
    $region12: #{dsconv3x3_forward.4} parent=5 // pred_fallthru
      _
    %p199 = scmp.lt.s32.totalorder %s12, 2
    // Predicated region
    $region33: #{dsconv3x3_forward.4} parent=5 // pred_check
      %p200 = pneg %p199
    $region34: #{dsconv3x3_forward.4} parent=5 // pred_check_branch
      %202 = sbr.rel (%p200) target = $region36
    $region35: #{dsconv3x3_forward.4} parent=5 // pred_region
      // Predicated region
      $region37: #{dsconv3x3_forward.4} parent=35 // pred_check
        %p203 = pneg %p32
      $region38: #{dsconv3x3_forward.4} parent=35 // pred_check_branch
        %205 = sbr.rel (%p203) target = $region40
      $region39: #{dsconv3x3_forward.4} parent=35 // pred_region
        %p206 = scmp.lt.s32.totalorder %s12, 1
        %s207 = scalar_select %p206, %s12, 1
        %s208 = smul.addr %s207, 4
        %s209 = smul.addr %s208, 4
        %s210 = scalar_lea.vmem %s0, %s209
      $region40: #{dsconv3x3_forward.4} parent=35 // pred_fallthru
        _
    $region36: #{dsconv3x3_forward.4} parent=5 // pred_fallthru
      _
    %p211 = scmp.le.s32.totalorder 1, %s12
    %p212 = scmp.lt.s32.totalorder %s12, 3
    %p213 = pnand %p211, %p212
    %p214 = pneg %p213
    // Predicated region
    $region41: #{dsconv3x3_forward.4} parent=5 // pred_check
      _
    $region42: #{dsconv3x3_forward.4} parent=5 // pred_check_branch
      %216 = sbr.rel (%p213) target = $region44
    $region43: #{dsconv3x3_forward.4} parent=5 // pred_region
      %s217 = ssub.s32 %s12, 1
      %p218 = scmp.lt.s32.totalorder %s17, 1
      %s219 = scalar_select %p218, %s17, 1
      %s220 = smul.addr %s219, 4
      %s221 = smul.addr %s220, 4
      %s222 = scalar_lea.vmem %s0, %s221
      %p223 = pneg %p38
      %p224 = pneg %p35
      %p225 = pneg %p59
      %p226 = pneg %p56
      %p227 = pneg %p80
      %p228 = pneg %p77
      %p229 = pneg %p101
      %p230 = pneg %p98
      %p231 = pneg %p122
      %p232 = pneg %p119
      %p233 = pneg %p143
      %p234 = pneg %p140
      %p235 = pneg %p169
      %p236 = pneg %p166
      %p237 = scmp.lt.s32.totalorder %s17, 1
      %s238 = scalar_select %p237, %s17, 1
      %s239 = smul.addr %s238, 8
      %s240 = scalar_lea.vmem %s6, %s239
      %p241 = scmp.lt.s32.totalorder %s17, 1
      %s242 = scalar_select %p241, %s17, 1
      %s243 = smul.addr %s242, 4
      %s244 = smul.addr %s243, 4
      %s245 = scalar_lea.vmem %s0, %s244
      %p246 = scmp.lt.s32.totalorder %s17, 1
      %s247 = scalar_select %p246, %s17, 1
      %s248 = smul.addr %s247, 8
      %s249 = scalar_lea.vmem %s6, %s248
      %v250 = vld [vmem:[%s245] sm:$0xff]
      %v251 = vld [vmem:[%s245 + $0x8] sm:$0xff]
      %v252 = vld [vmem:[%s1] sm:$0xf]
      %254 = vset.pattern.permute.xlu0 0
      %255 = vperm.xlu0 %254, %v252
      %v256 = vpop.permute.xlu0 %255
      %v258 = vunpack.c.l.s4 839922192
      %v259 = vunpack.c.0.s8 %v258
      %v260 = vperm.slane %v256, %v259
      %v262 = vmul.f32 %v250, %v260
      %v263 = vmul.f32 %v251, %v260
      %v264 = vadd.f32 %v262, 0.0
      %v265 = vadd.f32 %v263, 0.0
      %266 = vset.pattern.permute.xlu0 1
      %267 = vperm.xlu0 %266, %v252
      %v268 = vpop.permute.xlu0 %267
      %v270 = vunpack.c.l.s4 839922192
      %v271 = vunpack.c.0.s8 %v270
      %v272 = vperm.slane %v268, %v271
      %v274 = vmul.f32 %v250, %v272
      %v275 = vmul.f32 %v251, %v272
      %278 = vrot.lane.b32.xlu0 %v274, 127
      %v279 = vpop.permute.xlu0 %278
      %280 = vrot.lane.b32.xlu0 %v275, 127
      %v281 = vpop.permute.xlu0 %280
      %v282 = vrot.slane %v279, 4
      %v283 = vrot.slane %v281, 4
      %vm284 = vcmask 1043456
      %v285 = vsel %vm284, %v282, %v283
      %vm286 = vcmask 1039360
      %v287 = vsel %vm286, %v279, %v285
      %v288 = vsel %vm286, %v281, %v283
      %v291 = vadd.f32 %v264, %v287
      %v292 = vadd.f32 %v265, %v288
      %293 = vset.pattern.permute.xlu0 2
      %294 = vperm.xlu0 %293, %v252
      %v295 = vpop.permute.xlu0 %294
      %v297 = vunpack.c.l.s4 839922192
      %v298 = vunpack.c.0.s8 %v297
      %v299 = vperm.slane %v295, %v298
      %v301 = vmul.f32 %v250, %v299
      %v302 = vmul.f32 %v251, %v299
      %305 = vrot.lane.b32.xlu0 %v301, 126
      %v306 = vpop.permute.xlu0 %305
      %307 = vrot.lane.b32.xlu0 %v302, 126
      %v308 = vpop.permute.xlu0 %307
      %v309 = vrot.slane %v306, 4
      %v310 = vrot.slane %v308, 4
      %v311 = vsel %vm284, %v309, %v310
      %vm312 = vcmask 1031168
      %v313 = vsel %vm312, %v306, %v311
      %v314 = vsel %vm312, %v308, %v310
      %v317 = vadd.f32 %v291, %v313
      %v318 = vadd.f32 %v292, %v314
      %319 = vset.pattern.permute.xlu0 3
      %320 = vperm.xlu0 %319, %v252
      %v321 = vpop.permute.xlu0 %320
      %v323 = vunpack.c.l.s4 839922192
      %v324 = vunpack.c.0.s8 %v323
      %v325 = vperm.slane %v321, %v324
      %v327 = vmul.f32 %v250, %v325
      %v328 = vmul.f32 %v251, %v325
      %331 = vrot.lane.b32.xlu0 %v327, 110
      %v332 = vpop.permute.xlu0 %331
      %333 = vrot.lane.b32.xlu0 %v328, 110
      %v334 = vpop.permute.xlu0 %333
      %v335 = vrot.slane %v332, 4
      %v336 = vrot.slane %v334, 4
      %v337 = vsel %vm284, %v335, %v336
      %vm338 = vcmask 900096
      %v339 = vsel %vm338, %v332, %v337
      %v340 = vsel %vm338, %v334, %v336
      %v343 = vadd.f32 %v317, %v339
      %v344 = vadd.f32 %v318, %v340
      %345 = vset.pattern.permute.xlu0 4
      %346 = vperm.xlu0 %345, %v252
      %v347 = vpop.permute.xlu0 %346
      %v349 = vunpack.c.l.s4 839922192
      %v350 = vunpack.c.0.s8 %v349
      %v351 = vperm.slane %v347, %v350
      %v353 = vmul.f32 %v250, %v351
      %v354 = vmul.f32 %v251, %v351
      %357 = vrot.lane.b32.xlu0 %v353, 109
      %v358 = vpop.permute.xlu0 %357
      %359 = vrot.lane.b32.xlu0 %v354, 109
      %v360 = vpop.permute.xlu0 %359
      %v361 = vrot.slane %v358, 4
      %v362 = vrot.slane %v360, 4
      %v363 = vsel %vm284, %v361, %v362
      %vm364 = vcmask 891904
      %v365 = vsel %vm364, %v358, %v363
      %v366 = vsel %vm364, %v360, %v362
      %v369 = vadd.f32 %v343, %v365
      %v370 = vadd.f32 %v344, %v366
      %371 = vset.pattern.permute.xlu0 5
      %372 = vperm.xlu0 %371, %v252
      %v373 = vpop.permute.xlu0 %372
      %v375 = vunpack.c.l.s4 839922192
      %v376 = vunpack.c.0.s8 %v375
      %v377 = vperm.slane %v373, %v376
      %v379 = vmul.f32 %v250, %v377
      %v380 = vmul.f32 %v251, %v377
      %383 = vrot.lane.b32.xlu0 %v379, 108
      %v384 = vpop.permute.xlu0 %383
      %385 = vrot.lane.b32.xlu0 %v380, 108
      %v386 = vpop.permute.xlu0 %385
      %v387 = vrot.slane %v384, 4
      %v388 = vrot.slane %v386, 4
      %v389 = vsel %vm284, %v387, %v388
      %vm390 = vcmask 883712
      %v391 = vsel %vm390, %v384, %v389
      %v392 = vsel %vm390, %v386, %v388
      %v395 = vadd.f32 %v369, %v391
      %v396 = vadd.f32 %v370, %v392
      %397 = vset.pattern.permute.xlu0 6
      %398 = vperm.xlu0 %397, %v252
      %v399 = vpop.permute.xlu0 %398
      %v401 = vunpack.c.l.s4 839922192
      %v402 = vunpack.c.0.s8 %v401
      %v403 = vperm.slane %v399, %v402
      %v405 = vmul.f32 %v250, %v403
      %v406 = vmul.f32 %v251, %v403
      %409 = vrot.lane.b32.xlu0 %v405, 92
      %v410 = vpop.permute.xlu0 %409
      %411 = vrot.lane.b32.xlu0 %v406, 92
      %v412 = vpop.permute.xlu0 %411
      %v413 = vrot.slane %v410, 4
      %v414 = vrot.slane %v412, 4
      %v415 = vsel %vm284, %v413, %v414
      %vm416 = vcmask 752640
      %v417 = vsel %vm416, %v410, %v415
      %v418 = vsel %vm416, %v412, %v414
      %v421 = vadd.f32 %v395, %v417
      %v422 = vadd.f32 %v396, %v418
      %423 = vset.pattern.permute.xlu0 7
      %424 = vperm.xlu0 %423, %v252
      %v425 = vpop.permute.xlu0 %424
      %v427 = vunpack.c.l.s4 839922192
      %v428 = vunpack.c.0.s8 %v427
      %v429 = vperm.slane %v425, %v428
      %v431 = vmul.f32 %v250, %v429
      %v432 = vmul.f32 %v251, %v429
      %435 = vrot.lane.b32.xlu0 %v431, 91
      %v436 = vpop.permute.xlu0 %435
      %437 = vrot.lane.b32.xlu0 %v432, 91
      %v438 = vpop.permute.xlu0 %437
      %v439 = vrot.slane %v436, 4
      %v440 = vrot.slane %v438, 4
      %v441 = vsel %vm284, %v439, %v440
      %vm442 = vcmask 744448
      %v443 = vsel %vm442, %v436, %v441
      %v444 = vsel %vm442, %v438, %v440
      %v447 = vadd.f32 %v421, %v443
      %v448 = vadd.f32 %v422, %v444
      %449 = vset.pattern.permute.xlu0 8
      %450 = vperm.xlu0 %449, %v252
      %v451 = vpop.permute.xlu0 %450
      %v453 = vunpack.c.l.s4 839922192
      %v454 = vunpack.c.0.s8 %v453
      %v455 = vperm.slane %v451, %v454
      %v457 = vmul.f32 %v250, %v455
      %v458 = vmul.f32 %v251, %v455
      %461 = vrot.lane.b32.xlu0 %v457, 90
      %v462 = vpop.permute.xlu0 %461
      %463 = vrot.lane.b32.xlu0 %v458, 90
      %v464 = vpop.permute.xlu0 %463
      %v465 = vrot.slane %v462, 4
      %v466 = vrot.slane %v464, 4
      %v467 = vsel %vm284, %v465, %v466
      %vm468 = vcmask 736256
      %v469 = vsel %vm468, %v462, %v467
      %v470 = vsel %vm468, %v464, %v466
      %v473 = vadd.f32 %v447, %v469
      %v474 = vadd.f32 %v448, %v470
      %v475 = vld [vmem:[%s2] sm:$0xf]
      %477 = vset.pattern.permute.xlu0 0
      %478 = vperm.xlu0 %477, %v475
      %v479 = vpop.permute.xlu0 %478
      %v481 = vunpack.c.l.s4 839922192
      %v482 = vunpack.c.0.s8 %v481
      %v483 = vperm.slane %v479, %v482
      %v485 = vmul.f32 %v473, %v483
      %v486 = vmul.f32 %v474, %v483
      %v487 = vld [vmem:[%s3] sm:$0xf]
      %489 = vset.pattern.permute.xlu0 0
      %490 = vperm.xlu0 %489, %v487
      %v491 = vpop.permute.xlu0 %490
      %v493 = vunpack.c.l.s4 839922192
      %v494 = vunpack.c.0.s8 %v493
      %v495 = vperm.slane %v491, %v494
      %v497 = vadd.f32 %v485, %v495
      %v498 = vadd.f32 %v486, %v495
      %v499 = vmax.f32 %v497, 0.0
      %v500 = vmax.f32 %v498, 0.0
      %v501 = vld [vmem:[%s4] sm:$0xff]
      %503 = vset.pattern.permute.xlu0 0
      %504 = vperm.xlu0 %503, %v501
      %v505 = vpop.permute.xlu0 %504
      %v509 = vperm.slane %v499, 0
      %v510 = vperm.slane %v499, 4
      %v511 = vperm.slane %v500, 0
      %v515 = vperm.slane %v509, 0
      %v516 = vperm.slane %v510, 0
      %v517 = vperm.slane %v511, 0
      %v518 = vmul.f32 %v505, %v515
      %v519 = vmul.f32 %v505, %v516
      %v520 = vmul.f32 %v505, %v517
      %v521 = vadd.f32 %v518, 0.0
      %v522 = vadd.f32 %v519, 0.0
      %v523 = vadd.f32 %v520, 0.0
      %524 = vset.pattern.permute.xlu0 1
      %525 = vperm.xlu0 %524, %v501
      %v526 = vpop.permute.xlu0 %525
      %v528 = vperm.slane %v499, 1
      %v529 = vperm.slane %v499, 5
      %v530 = vperm.slane %v500, 1
      %v534 = vperm.slane %v528, 1
      %v535 = vperm.slane %v529, 1
      %v536 = vperm.slane %v530, 1
      %v537 = vmul.f32 %v526, %v534
      %v538 = vmul.f32 %v526, %v535
      %v539 = vmul.f32 %v526, %v536
      %v540 = vadd.f32 %v521, %v537
      %v541 = vadd.f32 %v522, %v538
      %v542 = vadd.f32 %v523, %v539
      %543 = vset.pattern.permute.xlu0 2
      %544 = vperm.xlu0 %543, %v501
      %v545 = vpop.permute.xlu0 %544
      %v547 = vperm.slane %v499, 2
      %v548 = vperm.slane %v499, 6
      %v549 = vperm.slane %v500, 2
      %v553 = vperm.slane %v547, 2
      %v554 = vperm.slane %v548, 2
      %v555 = vperm.slane %v549, 2
      %v556 = vmul.f32 %v545, %v553
      %v557 = vmul.f32 %v545, %v554
      %v558 = vmul.f32 %v545, %v555
      %v559 = vadd.f32 %v540, %v556
      %v560 = vadd.f32 %v541, %v557
      %v561 = vadd.f32 %v542, %v558
      %562 = vset.pattern.permute.xlu0 3
      %563 = vperm.xlu0 %562, %v501
      %v564 = vpop.permute.xlu0 %563
      %v566 = vperm.slane %v499, 3
      %v567 = vperm.slane %v499, 7
      %v568 = vperm.slane %v500, 3
      %v572 = vperm.slane %v566, 3
      %v573 = vperm.slane %v567, 3
      %v574 = vperm.slane %v568, 3
      %v575 = vmul.f32 %v564, %v572
      %v576 = vmul.f32 %v564, %v573
      %v577 = vmul.f32 %v564, %v574
      %v578 = vadd.f32 %v559, %v575
      %v579 = vadd.f32 %v560, %v576
      %v580 = vadd.f32 %v561, %v577
      %v581 = vld [vmem:[%s5] sm:$0x7]
      %v583 = vperm.slane %v581, 0
      %v584 = vperm.slane %v581, 1
      %v585 = vperm.slane %v581, 2
      %v589 = vmul.f32 %v578, %v583
      %v590 = vmul.f32 %v579, %v584
      %v591 = vmul.f32 %v580, %v585
      %v592 = vadd.f32 %v589, %v590
      %v593 = vadd.f32 %v592, %v591
      %594 = vadd.xlane.f32.xlu0 %v593
      %v595 = vpop.xlane.xlu0 %594
      %vm596 = vcmask 7168
      %597 = vst.msk [vmem:[%s249] sm:$0xff] %vm596, %v595
      %v598 = vmul.f32 %v589, %v578
      %v599 = vmul.f32 %v590, %v579
      %v600 = vmul.f32 %v591, %v580
      %v601 = vadd.f32 %v598, %v599
      %v602 = vadd.f32 %v601, %v600
      %603 = vadd.xlane.f32.xlu0 %v602
      %v604 = vpop.xlane.xlu0 %603
      %vm605 = vcmask 15368
      %606 = vst.msk [vmem:[%s249] sm:$0xff] %vm605, %v604
      %p607 = scmp.lt.s32.totalorder %s17, 1
      %s608 = scalar_select %p607, %s17, 1
      %s609 = smul.addr %s608, 8
      %s610 = scalar_lea.vmem %s6, %s609
      // Predicated region
      $region45: #{dsconv3x3_forward.4} parent=43 // pred_check
        %p611 = pneg %p166
      $region46: #{dsconv3x3_forward.4} parent=43 // pred_check_branch
        %613 = sbr.rel (%p611) target = $region48
      $region47: #{dsconv3x3_forward.4} parent=43 // pred_region
        _
      $region48: #{dsconv3x3_forward.4} parent=43 // pred_fallthru
        _
    $region44: #{dsconv3x3_forward.4} parent=5 // pred_fallthru
      _
    %p614 = scmp.le.s32.totalorder 2, %s12
    // Predicated region
    $region49: #{dsconv3x3_forward.4} parent=5 // pred_check
      %p615 = pneg %p614
    $region50: #{dsconv3x3_forward.4} parent=5 // pred_check_branch
      %617 = sbr.rel (%p615) target = $region52
    $region51: #{dsconv3x3_forward.4} parent=5 // pred_region
      %s618 = ssub.s32 %s12, 2
      // Predicated region
      $region53: #{dsconv3x3_forward.4} parent=51 // pred_check
        %p619 = pneg %p172
      $region54: #{dsconv3x3_forward.4} parent=51 // pred_check_branch
        %621 = sbr.rel (%p619) target = $region56
      $region55: #{dsconv3x3_forward.4} parent=51 // pred_region
        %p622 = scmp.lt.s32.totalorder %s18, 1
        %s623 = scalar_select %p622, %s18, 1
        %s624 = smul.addr %s623, 8
        %s625 = scalar_lea.vmem %s6, %s624
      $region56: #{dsconv3x3_forward.4} parent=51 // pred_fallthru
        _
    $region52: #{dsconv3x3_forward.4} parent=5 // pred_fallthru
      _
  $region6: #{dsconv3x3_forward.4} parent=0 // loop_footer
    %s16 = sadd.s32 1, %s12
  $region7: #{dsconv3x3_forward.4} parent=0 // loop_footer_branch
    %11 = sbr.rel target = $region3
  $region8: #{dsconv3x3_forward.4} parent=0 // loop_exit
    _

// kernel: dsconv3x3_forward.3
$region0: #{dsconv3x3_forward.3}
  #allocation0 [shape = 'u32[]', space=smem, size = 0x4, offset = 0x4, fixed_abs, tag = 'smem constant byte address 0x4 - core index']
  #allocation1 [shape = 'u32[72,128]{1,0:T(1,128)}', space=vmem, size = 0x9000, scoped, tag = 'internal scratch']
  %s0 = inlined_call_operand.vmem [shape: f32[2,4,512], index: 0, kind: input, shape index: {}]
  %s1 = inlined_call_operand.vmem [shape: f32[4,9], index: 1, kind: input, shape index: {}]
  %s2 = inlined_call_operand.vmem [shape: f32[1,384], index: 2, kind: input, shape index: {}]
  %s3 = inlined_call_operand.vmem [shape: f32[2,4,2], index: 3, kind: output, shape index: {}]
  %s4 = sld [smem:[#allocation0]]
  $region45: #{dsconv3x3_forward.3} parent=0
    _
  %s6 = ssub.s32 1, %s4
  %s7 = scalar_select 0, %s6, %s4
  loop: start=0, step=1, limit=4
  $region2: #{dsconv3x3_forward.3} parent=0 // loop_pre_header
    _
  $region3: #{dsconv3x3_forward.3} parent=0 // loop_header
    %s9 = sphi 0, %s13
    %p10 = scmp.ge.s32.totalorder %s9, 4
    %s19 = sphi 0, %s21
    %s22 = sphi 0, %s19
    %s23 = sphi 0, %s22
    %s39 = sphi 0, %s23
    %s43 = sphi 0, %s43
    %s45 = sphi 0, %s43
    %s46 = sphi 0, %s45
    %s60 = sphi 0, %s46
    %s64 = sphi 0, %s64
    %s66 = sphi 0, %s64
    %s67 = sphi 0, %s66
    %s81 = sphi 0, %s67
    %s87 = sphi 0, %s89
    %s90 = sphi 0, %s87
    %s91 = sphi 0, %s90
    %s107 = sphi 0, %s91
  $region4: #{dsconv3x3_forward.3} parent=0 // loop_header_branch
    %12 = sbr.rel (%p10) target = $region8
  $region5: #{dsconv3x3_forward.3} parent=0 // loop_body
    %s14 = ssub.s32 %s9, 1
    %s15 = ssub.s32 %s9, 2
    %s16 = sadd.s32 %s9, 1
    %s17 = ssub.s32 %s9, %s16
    %p18 = scmp.eq.s32.totalorder %s17, 0
    %s20 = sadd.s32 %s19, 1
    %s21 = scalar_select %p18, %s19, %s20
    %p24 = pneg %p18
    %p25 = scmp.eq.s32.totalorder %s9, 1
    %p26 = por %p24, %p25
    %p27 = scmp.ne.s32.totalorder %s19, %s22
    %p28 = scmp.eq.s32.totalorder %s9, 0
    %p29 = por %p27, %p28
    %p30 = scmp.ne.s32.totalorder %s19, %s22
    %p31 = scmp.eq.s32.totalorder %s14, 1
    %p32 = por %p30, %p31
    %p33 = scmp.ne.s32.totalorder %s22, %s23
    %p34 = scmp.eq.s32.totalorder %s14, 0
    %p35 = por %p33, %p34
    %p36 = scmp.ne.s32.totalorder %s22, %s23
    %p37 = scmp.eq.s32.totalorder %s15, 1
    %p38 = por %p36, %p37
    %p40 = scmp.ne.s32.totalorder %s23, %s39
    %p41 = scmp.eq.s32.totalorder %s15, 0
    %p42 = por %p40, %p41
    %s44 = sadd.s32 %s43, 1
    %p47 = scmp.eq.s32.totalorder %s9, 1
    %p48 = scmp.ne.s32.totalorder %s43, %s45
    %p49 = scmp.eq.s32.totalorder %s9, 0
    %p50 = por %p48, %p49
    %p51 = scmp.ne.s32.totalorder %s43, %s45
    %p52 = scmp.eq.s32.totalorder %s14, 1
    %p53 = por %p51, %p52
    %p54 = scmp.ne.s32.totalorder %s45, %s46
    %p55 = scmp.eq.s32.totalorder %s14, 0
    %p56 = por %p54, %p55
    %p57 = scmp.ne.s32.totalorder %s45, %s46
    %p58 = scmp.eq.s32.totalorder %s15, 1
    %p59 = por %p57, %p58
    %p61 = scmp.ne.s32.totalorder %s46, %s60
    %p62 = scmp.eq.s32.totalorder %s15, 0
    %p63 = por %p61, %p62
    %s65 = sadd.s32 %s64, 1
    %p68 = scmp.eq.s32.totalorder %s9, 1
    %p69 = scmp.ne.s32.totalorder %s64, %s66
    %p70 = scmp.eq.s32.totalorder %s9, 0
    %p71 = por %p69, %p70
    %p72 = scmp.ne.s32.totalorder %s64, %s66
    %p73 = scmp.eq.s32.totalorder %s14, 1
    %p74 = por %p72, %p73
    %p75 = scmp.ne.s32.totalorder %s66, %s67
    %p76 = scmp.eq.s32.totalorder %s14, 0
    %p77 = por %p75, %p76
    %p78 = scmp.ne.s32.totalorder %s66, %s67
    %p79 = scmp.eq.s32.totalorder %s15, 1
    %p80 = por %p78, %p79
    %p82 = scmp.ne.s32.totalorder %s67, %s81
    %p83 = scmp.eq.s32.totalorder %s15, 0
    %p84 = por %p82, %p83
    %s85 = ssub.s32 %s9, %s16
    %p86 = scmp.eq.s32.totalorder %s85, 0
    %s88 = sadd.s32 %s87, 1
    %s89 = scalar_select %p86, %s87, %s88
    %p92 = pneg %p86
    %p93 = scmp.eq.s32.totalorder %s9, 1
    %p94 = por %p92, %p93
    %p95 = scmp.ne.s32.totalorder %s87, %s90
    %p96 = scmp.eq.s32.totalorder %s9, 0
    %p97 = por %p95, %p96
    %p98 = scmp.ne.s32.totalorder %s87, %s90
    %p99 = scmp.eq.s32.totalorder %s14, 1
    %p100 = por %p98, %p99
    %p101 = scmp.ne.s32.totalorder %s90, %s91
    %p102 = scmp.eq.s32.totalorder %s14, 0
    %p103 = por %p101, %p102
    %p104 = scmp.ne.s32.totalorder %s90, %s91
    %p105 = scmp.eq.s32.totalorder %s15, 1
    %p106 = por %p104, %p105
    %p108 = scmp.ne.s32.totalorder %s91, %s107
    %p109 = scmp.eq.s32.totalorder %s15, 0
    %p110 = por %p108, %p109
    %p111 = scmp.le.s32.totalorder 1, %s9
    %p112 = scmp.lt.s32.totalorder %s9, 3
    %p113 = pnand %p111, %p112
    %p114 = pneg %p113
    // Predicated region
    $region9: #{dsconv3x3_forward.3} parent=5 // pred_check
      _
    $region10: #{dsconv3x3_forward.3} parent=5 // pred_check_branch
      %116 = sbr.rel (%p113) target = $region12
    $region11: #{dsconv3x3_forward.3} parent=5 // pred_region
      %s117 = ssub.s32 %s9, 1
      // Predicated region
      $region13: #{dsconv3x3_forward.3} parent=11 // pred_check
        %p118 = pneg %p56
      $region14: #{dsconv3x3_forward.3} parent=11 // pred_check_branch
        %120 = sbr.rel (%p118) target = $region16
      $region15: #{dsconv3x3_forward.3} parent=11 // pred_region
        _
      $region16: #{dsconv3x3_forward.3} parent=11 // pred_fallthru
        _
      // Predicated region
      $region17: #{dsconv3x3_forward.3} parent=11 // pred_check
        %p121 = pneg %p77
      $region18: #{dsconv3x3_forward.3} parent=11 // pred_check_branch
        %123 = sbr.rel (%p121) target = $region20
      $region19: #{dsconv3x3_forward.3} parent=11 // pred_region
        _
      $region20: #{dsconv3x3_forward.3} parent=11 // pred_fallthru
        _
    $region12: #{dsconv3x3_forward.3} parent=5 // pred_fallthru
      _
    %p124 = scmp.lt.s32.totalorder %s9, 2
    // Predicated region
    $region21: #{dsconv3x3_forward.3} parent=5 // pred_check
      %p125 = pneg %p124
    $region22: #{dsconv3x3_forward.3} parent=5 // pred_check_branch
      %127 = sbr.rel (%p125) target = $region24
    $region23: #{dsconv3x3_forward.3} parent=5 // pred_region
      // Predicated region
      $region25: #{dsconv3x3_forward.3} parent=23 // pred_check
        %p128 = pneg %p29
      $region26: #{dsconv3x3_forward.3} parent=23 // pred_check_branch
        %130 = sbr.rel (%p128) target = $region28
      $region27: #{dsconv3x3_forward.3} parent=23 // pred_region
        %p131 = scmp.lt.s32.totalorder %s9, 1
        %s132 = scalar_select %p131, %s9, 1
        %s133 = smul.addr %s132, 4
        %s134 = smul.addr %s133, 4
        %s135 = scalar_lea.vmem %s0, %s134
      $region28: #{dsconv3x3_forward.3} parent=23 // pred_fallthru
        _
    $region24: #{dsconv3x3_forward.3} parent=5 // pred_fallthru
      _
    %p136 = scmp.le.s32.totalorder 1, %s9
    %p137 = scmp.lt.s32.totalorder %s9, 3
    %p138 = pnand %p136, %p137
    %p139 = pneg %p138
    // Predicated region
    $region29: #{dsconv3x3_forward.3} parent=5 // pred_check
      _
    $region30: #{dsconv3x3_forward.3} parent=5 // pred_check_branch
      %141 = sbr.rel (%p138) target = $region32
    $region31: #{dsconv3x3_forward.3} parent=5 // pred_region
      %s142 = ssub.s32 %s9, 1
      %p143 = scmp.lt.s32.totalorder %s14, 1
      %s144 = scalar_select %p143, %s14, 1
      %s145 = smul.addr %s144, 4
      %s146 = smul.addr %s145, 4
      %s147 = scalar_lea.vmem %s0, %s146
      %p148 = pneg %p35
      %p149 = pneg %p32
      %p150 = pneg %p56
      %p151 = pneg %p53
      %p152 = pneg %p77
      %p153 = pneg %p74
      %p154 = pneg %p103
      %p155 = pneg %p100
      %p156 = scmp.lt.s32.totalorder %s14, 1
      %s157 = scalar_select %p156, %s14, 1
      %s158 = smul.addr %s157, 4
      %s159 = scalar_lea.vmem %s3, %s158
      %p160 = scmp.lt.s32.totalorder %s14, 1
      %s161 = scalar_select %p160, %s14, 1
      %s162 = smul.addr %s161, 4
      %s163 = smul.addr %s162, 4
      %s164 = scalar_lea.vmem %s0, %s163
      %p165 = scmp.lt.s32.totalorder %s14, 1
      %s166 = scalar_select %p165, %s14, 1
      %s167 = smul.addr %s166, 4
      %s168 = scalar_lea.vmem %s3, %s167
      %v169 = vld [vmem:[%s164] sm:$0xff]
      %v170 = vld [vmem:[%s164 + $0x8] sm:$0xff]
      %v171 = vld [vmem:[%s1] sm:$0xf]
      %173 = vset.pattern.permute.xlu0 0
      %174 = vperm.xlu0 %173, %v171
      %v175 = vpop.permute.xlu0 %174
      %v177 = vunpack.c.l.s4 839922192
      %v178 = vunpack.c.0.s8 %v177
      %v179 = vperm.slane %v175, %v178
      %v181 = vmul.f32 %v169, %v179
      %v182 = vmul.f32 %v170, %v179
      %v183 = vadd.f32 %v181, 0.0
      %v184 = vadd.f32 %v182, 0.0
      %185 = vset.pattern.permute.xlu0 1
      %186 = vperm.xlu0 %185, %v171
      %v187 = vpop.permute.xlu0 %186
      %v189 = vunpack.c.l.s4 839922192
      %v190 = vunpack.c.0.s8 %v189
      %v191 = vperm.slane %v187, %v190
      %v193 = vmul.f32 %v169, %v191
      %v194 = vmul.f32 %v170, %v191
      %197 = vrot.lane.b32.xlu0 %v193, 127
      %v198 = vpop.permute.xlu0 %197
      %199 = vrot.lane.b32.xlu0 %v194, 127
      %v200 = vpop.permute.xlu0 %199
      %v201 = vrot.slane %v198, 4
      %v202 = vrot.slane %v200, 4
      %vm203 = vcmask 1043456
      %v204 = vsel %vm203, %v201, %v202
      %vm205 = vcmask 1039360
      %v206 = vsel %vm205, %v198, %v204
      %v207 = vsel %vm205, %v200, %v202
      %v210 = vadd.f32 %v183, %v206
      %v211 = vadd.f32 %v184, %v207
      %212 = vset.pattern.permute.xlu0 2
      %213 = vperm.xlu0 %212, %v171
      %v214 = vpop.permute.xlu0 %213
      %v216 = vunpack.c.l.s4 839922192
      %v217 = vunpack.c.0.s8 %v216
      %v218 = vperm.slane %v214, %v217
      %v220 = vmul.f32 %v169, %v218
      %v221 = vmul.f32 %v170, %v218
      %224 = vrot.lane.b32.xlu0 %v220, 126
      %v225 = vpop.permute.xlu0 %224
      %226 = vrot.lane.b32.xlu0 %v221, 126
      %v227 = vpop.permute.xlu0 %226
      %v228 = vrot.slane %v225, 4
      %v229 = vrot.slane %v227, 4
      %v230 = vsel %vm203, %v228, %v229
      %vm231 = vcmask 1031168
      %v232 = vsel %vm231, %v225, %v230
      %v233 = vsel %vm231, %v227, %v229
      %v236 = vadd.f32 %v210, %v232
      %v237 = vadd.f32 %v211, %v233
      %238 = vset.pattern.permute.xlu0 3
      %239 = vperm.xlu0 %238, %v171
      %v240 = vpop.permute.xlu0 %239
      %v242 = vunpack.c.l.s4 839922192
      %v243 = vunpack.c.0.s8 %v242
      %v244 = vperm.slane %v240, %v243
      %v246 = vmul.f32 %v169, %v244
      %v247 = vmul.f32 %v170, %v244
      %250 = vrot.lane.b32.xlu0 %v246, 110
      %v251 = vpop.permute.xlu0 %250
      %252 = vrot.lane.b32.xlu0 %v247, 110
      %v253 = vpop.permute.xlu0 %252
      %v254 = vrot.slane %v251, 4
      %v255 = vrot.slane %v253, 4
      %v256 = vsel %vm203, %v254, %v255
      %vm257 = vcmask 900096
      %v258 = vsel %vm257, %v251, %v256
      %v259 = vsel %vm257, %v253, %v255
      %v262 = vadd.f32 %v236, %v258
      %v263 = vadd.f32 %v237, %v259
      %264 = vset.pattern.permute.xlu0 4
      %265 = vperm.xlu0 %264, %v171
      %v266 = vpop.permute.xlu0 %265
      %v268 = vunpack.c.l.s4 839922192
      %v269 = vunpack.c.0.s8 %v268
      %v270 = vperm.slane %v266, %v269
      %v272 = vmul.f32 %v169, %v270
      %v273 = vmul.f32 %v170, %v270
      %276 = vrot.lane.b32.xlu0 %v272, 109
      %v277 = vpop.permute.xlu0 %276
      %278 = vrot.lane.b32.xlu0 %v273, 109
      %v279 = vpop.permute.xlu0 %278
      %v280 = vrot.slane %v277, 4
      %v281 = vrot.slane %v279, 4
      %v282 = vsel %vm203, %v280, %v281
      %vm283 = vcmask 891904
      %v284 = vsel %vm283, %v277, %v282
      %v285 = vsel %vm283, %v279, %v281
      %v288 = vadd.f32 %v262, %v284
      %v289 = vadd.f32 %v263, %v285
      %290 = vset.pattern.permute.xlu0 5
      %291 = vperm.xlu0 %290, %v171
      %v292 = vpop.permute.xlu0 %291
      %v294 = vunpack.c.l.s4 839922192
      %v295 = vunpack.c.0.s8 %v294
      %v296 = vperm.slane %v292, %v295
      %v298 = vmul.f32 %v169, %v296
      %v299 = vmul.f32 %v170, %v296
      %302 = vrot.lane.b32.xlu0 %v298, 108
      %v303 = vpop.permute.xlu0 %302
      %304 = vrot.lane.b32.xlu0 %v299, 108
      %v305 = vpop.permute.xlu0 %304
      %v306 = vrot.slane %v303, 4
      %v307 = vrot.slane %v305, 4
      %v308 = vsel %vm203, %v306, %v307
      %vm309 = vcmask 883712
      %v310 = vsel %vm309, %v303, %v308
      %v311 = vsel %vm309, %v305, %v307
      %v314 = vadd.f32 %v288, %v310
      %v315 = vadd.f32 %v289, %v311
      %316 = vset.pattern.permute.xlu0 6
      %317 = vperm.xlu0 %316, %v171
      %v318 = vpop.permute.xlu0 %317
      %v320 = vunpack.c.l.s4 839922192
      %v321 = vunpack.c.0.s8 %v320
      %v322 = vperm.slane %v318, %v321
      %v324 = vmul.f32 %v169, %v322
      %v325 = vmul.f32 %v170, %v322
      %328 = vrot.lane.b32.xlu0 %v324, 92
      %v329 = vpop.permute.xlu0 %328
      %330 = vrot.lane.b32.xlu0 %v325, 92
      %v331 = vpop.permute.xlu0 %330
      %v332 = vrot.slane %v329, 4
      %v333 = vrot.slane %v331, 4
      %v334 = vsel %vm203, %v332, %v333
      %vm335 = vcmask 752640
      %v336 = vsel %vm335, %v329, %v334
      %v337 = vsel %vm335, %v331, %v333
      %v340 = vadd.f32 %v314, %v336
      %v341 = vadd.f32 %v315, %v337
      %342 = vset.pattern.permute.xlu0 7
      %343 = vperm.xlu0 %342, %v171
      %v344 = vpop.permute.xlu0 %343
      %v346 = vunpack.c.l.s4 839922192
      %v347 = vunpack.c.0.s8 %v346
      %v348 = vperm.slane %v344, %v347
      %v350 = vmul.f32 %v169, %v348
      %v351 = vmul.f32 %v170, %v348
      %354 = vrot.lane.b32.xlu0 %v350, 91
      %v355 = vpop.permute.xlu0 %354
      %356 = vrot.lane.b32.xlu0 %v351, 91
      %v357 = vpop.permute.xlu0 %356
      %v358 = vrot.slane %v355, 4
      %v359 = vrot.slane %v357, 4
      %v360 = vsel %vm203, %v358, %v359
      %vm361 = vcmask 744448
      %v362 = vsel %vm361, %v355, %v360
      %v363 = vsel %vm361, %v357, %v359
      %v366 = vadd.f32 %v340, %v362
      %v367 = vadd.f32 %v341, %v363
      %368 = vset.pattern.permute.xlu0 8
      %369 = vperm.xlu0 %368, %v171
      %v370 = vpop.permute.xlu0 %369
      %v372 = vunpack.c.l.s4 839922192
      %v373 = vunpack.c.0.s8 %v372
      %v374 = vperm.slane %v370, %v373
      %v376 = vmul.f32 %v169, %v374
      %v377 = vmul.f32 %v170, %v374
      %380 = vrot.lane.b32.xlu0 %v376, 90
      %v381 = vpop.permute.xlu0 %380
      %382 = vrot.lane.b32.xlu0 %v377, 90
      %v383 = vpop.permute.xlu0 %382
      %v384 = vrot.slane %v381, 4
      %v385 = vrot.slane %v383, 4
      %v386 = vsel %vm203, %v384, %v385
      %vm387 = vcmask 736256
      %v388 = vsel %vm387, %v381, %v386
      %v389 = vsel %vm387, %v383, %v385
      %v392 = vadd.f32 %v366, %v388
      %v393 = vadd.f32 %v367, %v389
      %v394 = vld [vmem:[%s2] sm:$0x7]
      %v396 = vperm.slane %v394, 0
      %v397 = vperm.slane %v394, 1
      %v398 = vperm.slane %v394, 2
      %v400 = vrot.slane %v397, 4
      %v401 = vsel %vm203, %v396, %v400
      %v403 = vmul.f32 %v392, %v401
      %v404 = vmul.f32 %v393, %v398
      %407 = vst [vmem:[#allocation1] ss:$2 sm:$0xff] %v403
      %s408 = scalar_lea.vmem [#allocation1], 16
      %409 = vst [vmem:[%s408] ss:$2 sm:$0xff] %v404
      %v410 = vld.sshfl [vmem:[#allocation1] sm:$0xff pattern:$0x75316420]
      %v411 = vld.sshfl [vmem:[#allocation1 + $0x8] sm:$0xff pattern:$0x75316420]
      %v412 = vld.sshfl [vmem:[#allocation1 + $0x10] sm:$0xff pattern:$0x75316420]
      %v416 = vsel %vm203, %v410, 0.0
      %v417 = vsel %vm203, %v411, 0.0
      %v418 = vadd.f32 %v416, %v417
      %v419 = vsel %vm203, %v412, 0.0
      %v420 = vadd.f32 %v418, %v419
      %421 = vadd.xlane.f32.xlu0 %v420
      %v422 = vpop.xlane.xlu0 %421
      %vm423 = vcmask 3072
      %424 = vst.msk [vmem:[%s168] sm:$0xf] %vm423, %v422
      %v425 = vmul.f32 %v403, %v392
      %v426 = vmul.f32 %v404, %v393
      %429 = vst [vmem:[#allocation1] ss:$2 sm:$0xff] %v425
      %s430 = scalar_lea.vmem [#allocation1], 16
      %431 = vst [vmem:[%s430] ss:$2 sm:$0xff] %v426
      %v432 = vld.sshfl [vmem:[#allocation1] sm:$0xff pattern:$0x75316420]
      %v433 = vld.sshfl [vmem:[#allocation1 + $0x8] sm:$0xff pattern:$0x75316420]
      %v434 = vld.sshfl [vmem:[#allocation1 + $0x10] sm:$0xff pattern:$0x75316420]
      %v438 = vsel %vm203, %v432, 0.0
      %v439 = vsel %vm203, %v433, 0.0
      %v440 = vadd.f32 %v438, %v439
      %v441 = vsel %vm203, %v434, 0.0
      %v442 = vadd.f32 %v440, %v441
      %443 = vadd.xlane.f32.xlu0 %v442
      %v444 = vpop.xlane.xlu0 %443
      %vm445 = vcmask 11272
      %446 = vst.msk [vmem:[%s168] sm:$0xf] %vm445, %v444
      %p447 = scmp.lt.s32.totalorder %s14, 1
      %s448 = scalar_select %p447, %s14, 1
      %s449 = smul.addr %s448, 4
      %s450 = scalar_lea.vmem %s3, %s449
      // Predicated region
      $region33: #{dsconv3x3_forward.3} parent=31 // pred_check
        %p451 = pneg %p100
      $region34: #{dsconv3x3_forward.3} parent=31 // pred_check_branch
        %453 = sbr.rel (%p451) target = $region36
      $region35: #{dsconv3x3_forward.3} parent=31 // pred_region
        _
      $region36: #{dsconv3x3_forward.3} parent=31 // pred_fallthru
        _
    $region32: #{dsconv3x3_forward.3} parent=5 // pred_fallthru
      _
    %p454 = scmp.le.s32.totalorder 2, %s9
    // Predicated region
    $region37: #{dsconv3x3_forward.3} parent=5 // pred_check
      %p455 = pneg %p454
    $region38: #{dsconv3x3_forward.3} parent=5 // pred_check_branch
      %457 = sbr.rel (%p455) target = $region40
    $region39: #{dsconv3x3_forward.3} parent=5 // pred_region
      %s458 = ssub.s32 %s9, 2
      // Predicated region
      $region41: #{dsconv3x3_forward.3} parent=39 // pred_check
        %p459 = pneg %p106
      $region42: #{dsconv3x3_forward.3} parent=39 // pred_check_branch
        %461 = sbr.rel (%p459) target = $region44
      $region43: #{dsconv3x3_forward.3} parent=39 // pred_region
        %p462 = scmp.lt.s32.totalorder %s15, 1
        %s463 = scalar_select %p462, %s15, 1
        %s464 = smul.addr %s463, 4
        %s465 = scalar_lea.vmem %s3, %s464
      $region44: #{dsconv3x3_forward.3} parent=39 // pred_fallthru
        _
    $region40: #{dsconv3x3_forward.3} parent=5 // pred_fallthru
      _
  $region6: #{dsconv3x3_forward.3} parent=0 // loop_footer
    %s13 = sadd.s32 1, %s9
  $region7: #{dsconv3x3_forward.3} parent=0 // loop_footer_branch
    %8 = sbr.rel target = $region3
  $region8: #{dsconv3x3_forward.3} parent=0 // loop_exit
    _

// kernel: dsconv3x3_forward.5
$region0: #{dsconv3x3_forward.5}
  #allocation0 [shape = 'u32[]', space=smem, size = 0x4, offset = 0x4, fixed_abs, tag = 'smem constant byte address 0x4 - core index']
  #allocation1 [shape = 'u32[72,128]{1,0:T(1,128)}', space=vmem, size = 0x9000, scoped, tag = 'internal scratch']
  %s0 = inlined_call_operand.vmem [shape: f32[2,4,512], index: 0, kind: input, shape index: {}]
  %s1 = inlined_call_operand.vmem [shape: f32[4,9], index: 1, kind: input, shape index: {}]
  %s2 = inlined_call_operand.vmem [shape: f32[4,1], index: 2, kind: input, shape index: {}]
  %s3 = inlined_call_operand.vmem [shape: f32[4,1], index: 3, kind: input, shape index: {}]
  %s4 = inlined_call_operand.vmem [shape: f32[8,4], index: 4, kind: input, shape index: {}]
  %s5 = inlined_call_operand.vmem [shape: f32[8,1], index: 5, kind: input, shape index: {}]
  %s6 = inlined_call_operand.vmem [shape: f32[8,1], index: 6, kind: input, shape index: {}]
  %s7 = inlined_call_operand.vmem [shape: f32[2,8,384], index: 7, kind: output, shape index: {}]
  %s8 = sld [smem:[#allocation0]]
  $region61: #{dsconv3x3_forward.5} parent=0
    _
  %s10 = ssub.s32 1, %s8
  %s11 = scalar_select 0, %s10, %s8
  loop: start=0, step=1, limit=4
  $region2: #{dsconv3x3_forward.5} parent=0 // loop_pre_header
    _
  $region3: #{dsconv3x3_forward.5} parent=0 // loop_header
    %s13 = sphi 0, %s17
    %p14 = scmp.ge.s32.totalorder %s13, 4
    %s23 = sphi 0, %s25
    %s26 = sphi 0, %s23
    %s27 = sphi 0, %s26
    %s43 = sphi 0, %s27
    %s47 = sphi 0, %s47
    %s49 = sphi 0, %s47
    %s50 = sphi 0, %s49
    %s64 = sphi 0, %s50
    %s68 = sphi 0, %s68
    %s70 = sphi 0, %s68
    %s71 = sphi 0, %s70
    %s85 = sphi 0, %s71
    %s89 = sphi 0, %s89
    %s91 = sphi 0, %s89
    %s92 = sphi 0, %s91
    %s106 = sphi 0, %s92
    %s110 = sphi 0, %s110
    %s112 = sphi 0, %s110
    %s113 = sphi 0, %s112
    %s127 = sphi 0, %s113
    %s131 = sphi 0, %s131
    %s133 = sphi 0, %s131
    %s134 = sphi 0, %s133
    %s148 = sphi 0, %s134
    %s152 = sphi 0, %s152
    %s154 = sphi 0, %s152
    %s155 = sphi 0, %s154
    %s169 = sphi 0, %s155
    %s175 = sphi 0, %s177
    %s178 = sphi 0, %s175
    %s179 = sphi 0, %s178
    %s195 = sphi 0, %s179
  $region4: #{dsconv3x3_forward.5} parent=0 // loop_header_branch
    %16 = sbr.rel (%p14) target = $region8
  $region5: #{dsconv3x3_forward.5} parent=0 // loop_body
    %s18 = ssub.s32 %s13, 1
    %s19 = ssub.s32 %s13, 2
    %s20 = sadd.s32 %s13, 1
    %s21 = ssub.s32 %s13, %s20
    %p22 = scmp.eq.s32.totalorder %s21, 0
    %s24 = sadd.s32 %s23, 1
    %s25 = scalar_select %p22, %s23, %s24
    %p28 = pneg %p22
    %p29 = scmp.eq.s32.totalorder %s13, 1
    %p30 = por %p28, %p29
    %p31 = scmp.ne.s32.totalorder %s23, %s26
    %p32 = scmp.eq.s32.totalorder %s13, 0
    %p33 = por %p31, %p32
    %p34 = scmp.ne.s32.totalorder %s23, %s26
    %p35 = scmp.eq.s32.totalorder %s18, 1
    %p36 = por %p34, %p35
    %p37 = scmp.ne.s32.totalorder %s26, %s27
    %p38 = scmp.eq.s32.totalorder %s18, 0
    %p39 = por %p37, %p38
    %p40 = scmp.ne.s32.totalorder %s26, %s27
    %p41 = scmp.eq.s32.totalorder %s19, 1
    %p42 = por %p40, %p41
    %p44 = scmp.ne.s32.totalorder %s27, %s43
    %p45 = scmp.eq.s32.totalorder %s19, 0
    %p46 = por %p44, %p45
    %s48 = sadd.s32 %s47, 1
    %p51 = scmp.eq.s32.totalorder %s13, 1
    %p52 = scmp.ne.s32.totalorder %s47, %s49
    %p53 = scmp.eq.s32.totalorder %s13, 0
    %p54 = por %p52, %p53
    %p55 = scmp.ne.s32.totalorder %s47, %s49
    %p56 = scmp.eq.s32.totalorder %s18, 1
    %p57 = por %p55, %p56
    %p58 = scmp.ne.s32.totalorder %s49, %s50
    %p59 = scmp.eq.s32.totalorder %s18, 0
    %p60 = por %p58, %p59
    %p61 = scmp.ne.s32.totalorder %s49, %s50
    %p62 = scmp.eq.s32.totalorder %s19, 1
    %p63 = por %p61, %p62
    %p65 = scmp.ne.s32.totalorder %s50, %s64
    %p66 = scmp.eq.s32.totalorder %s19, 0
    %p67 = por %p65, %p66
    %s69 = sadd.s32 %s68, 1
    %p72 = scmp.eq.s32.totalorder %s13, 1
    %p73 = scmp.ne.s32.totalorder %s68, %s70
    %p74 = scmp.eq.s32.totalorder %s13, 0
    %p75 = por %p73, %p74
    %p76 = scmp.ne.s32.totalorder %s68, %s70
    %p77 = scmp.eq.s32.totalorder %s18, 1
    %p78 = por %p76, %p77
    %p79 = scmp.ne.s32.totalorder %s70, %s71
    %p80 = scmp.eq.s32.totalorder %s18, 0
    %p81 = por %p79, %p80
    %p82 = scmp.ne.s32.totalorder %s70, %s71
    %p83 = scmp.eq.s32.totalorder %s19, 1
    %p84 = por %p82, %p83
    %p86 = scmp.ne.s32.totalorder %s71, %s85
    %p87 = scmp.eq.s32.totalorder %s19, 0
    %p88 = por %p86, %p87
    %s90 = sadd.s32 %s89, 1
    %p93 = scmp.eq.s32.totalorder %s13, 1
    %p94 = scmp.ne.s32.totalorder %s89, %s91
    %p95 = scmp.eq.s32.totalorder %s13, 0
    %p96 = por %p94, %p95
    %p97 = scmp.ne.s32.totalorder %s89, %s91
    %p98 = scmp.eq.s32.totalorder %s18, 1
    %p99 = por %p97, %p98
    %p100 = scmp.ne.s32.totalorder %s91, %s92
    %p101 = scmp.eq.s32.totalorder %s18, 0
    %p102 = por %p100, %p101
    %p103 = scmp.ne.s32.totalorder %s91, %s92
    %p104 = scmp.eq.s32.totalorder %s19, 1
    %p105 = por %p103, %p104
    %p107 = scmp.ne.s32.totalorder %s92, %s106
    %p108 = scmp.eq.s32.totalorder %s19, 0
    %p109 = por %p107, %p108
    %s111 = sadd.s32 %s110, 1
    %p114 = scmp.eq.s32.totalorder %s13, 1
    %p115 = scmp.ne.s32.totalorder %s110, %s112
    %p116 = scmp.eq.s32.totalorder %s13, 0
    %p117 = por %p115, %p116
    %p118 = scmp.ne.s32.totalorder %s110, %s112
    %p119 = scmp.eq.s32.totalorder %s18, 1
    %p120 = por %p118, %p119
    %p121 = scmp.ne.s32.totalorder %s112, %s113
    %p122 = scmp.eq.s32.totalorder %s18, 0
    %p123 = por %p121, %p122
    %p124 = scmp.ne.s32.totalorder %s112, %s113
    %p125 = scmp.eq.s32.totalorder %s19, 1
    %p126 = por %p124, %p125
    %p128 = scmp.ne.s32.totalorder %s113, %s127
    %p129 = scmp.eq.s32.totalorder %s19, 0
    %p130 = por %p128, %p129
    %s132 = sadd.s32 %s131, 1
    %p135 = scmp.eq.s32.totalorder %s13, 1
    %p136 = scmp.ne.s32.totalorder %s131, %s133
    %p137 = scmp.eq.s32.totalorder %s13, 0
    %p138 = por %p136, %p137
    %p139 = scmp.ne.s32.totalorder %s131, %s133
    %p140 = scmp.eq.s32.totalorder %s18, 1
    %p141 = por %p139, %p140
    %p142 = scmp.ne.s32.totalorder %s133, %s134
    %p143 = scmp.eq.s32.totalorder %s18, 0
    %p144 = por %p142, %p143
    %p145 = scmp.ne.s32.totalorder %s133, %s134
    %p146 = scmp.eq.s32.totalorder %s19, 1
    %p147 = por %p145, %p146
    %p149 = scmp.ne.s32.totalorder %s134, %s148
    %p150 = scmp.eq.s32.totalorder %s19, 0
    %p151 = por %p149, %p150
    %s153 = sadd.s32 %s152, 1
    %p156 = scmp.eq.s32.totalorder %s13, 1
    %p157 = scmp.ne.s32.totalorder %s152, %s154
    %p158 = scmp.eq.s32.totalorder %s13, 0
    %p159 = por %p157, %p158
    %p160 = scmp.ne.s32.totalorder %s152, %s154
    %p161 = scmp.eq.s32.totalorder %s18, 1
    %p162 = por %p160, %p161
    %p163 = scmp.ne.s32.totalorder %s154, %s155
    %p164 = scmp.eq.s32.totalorder %s18, 0
    %p165 = por %p163, %p164
    %p166 = scmp.ne.s32.totalorder %s154, %s155
    %p167 = scmp.eq.s32.totalorder %s19, 1
    %p168 = por %p166, %p167
    %p170 = scmp.ne.s32.totalorder %s155, %s169
    %p171 = scmp.eq.s32.totalorder %s19, 0
    %p172 = por %p170, %p171
    %s173 = ssub.s32 %s13, %s20
    %p174 = scmp.eq.s32.totalorder %s173, 0
    %s176 = sadd.s32 %s175, 1
    %s177 = scalar_select %p174, %s175, %s176
    %p180 = pneg %p174
    %p181 = scmp.eq.s32.totalorder %s13, 1
    %p182 = por %p180, %p181
    %p183 = scmp.ne.s32.totalorder %s175, %s178
    %p184 = scmp.eq.s32.totalorder %s13, 0
    %p185 = por %p183, %p184
    %p186 = scmp.ne.s32.totalorder %s175, %s178
    %p187 = scmp.eq.s32.totalorder %s18, 1
    %p188 = por %p186, %p187
    %p189 = scmp.ne.s32.totalorder %s178, %s179
    %p190 = scmp.eq.s32.totalorder %s18, 0
    %p191 = por %p189, %p190
    %p192 = scmp.ne.s32.totalorder %s178, %s179
    %p193 = scmp.eq.s32.totalorder %s19, 1
    %p194 = por %p192, %p193
    %p196 = scmp.ne.s32.totalorder %s179, %s195
    %p197 = scmp.eq.s32.totalorder %s19, 0
    %p198 = por %p196, %p197
    %p199 = scmp.le.s32.totalorder 1, %s13
    %p200 = scmp.lt.s32.totalorder %s13, 3
    %p201 = pnand %p199, %p200
    %p202 = pneg %p201
    // Predicated region
    $region9: #{dsconv3x3_forward.5} parent=5 // pred_check
      _
    $region10: #{dsconv3x3_forward.5} parent=5 // pred_check_branch
      %204 = sbr.rel (%p201) target = $region12
    $region11: #{dsconv3x3_forward.5} parent=5 // pred_region
      %s205 = ssub.s32 %s13, 1
      // Predicated region
      $region13: #{dsconv3x3_forward.5} parent=11 // pred_check
        %p206 = pneg %p60
      $region14: #{dsconv3x3_forward.5} parent=11 // pred_check_branch
        %208 = sbr.rel (%p206) target = $region16
      $region15: #{dsconv3x3_forward.5} parent=11 // pred_region
        _
      $region16: #{dsconv3x3_forward.5} parent=11 // pred_fallthru
        _
      // Predicated region
      $region17: #{dsconv3x3_forward.5} parent=11 // pred_check
        %p209 = pneg %p81
      $region18: #{dsconv3x3_forward.5} parent=11 // pred_check_branch
        %211 = sbr.rel (%p209) target = $region20
      $region19: #{dsconv3x3_forward.5} parent=11 // pred_region
        _
      $region20: #{dsconv3x3_forward.5} parent=11 // pred_fallthru
        _
      // Predicated region
      $region21: #{dsconv3x3_forward.5} parent=11 // pred_check
        %p212 = pneg %p102
      $region22: #{dsconv3x3_forward.5} parent=11 // pred_check_branch
        %214 = sbr.rel (%p212) target = $region24
      $region23: #{dsconv3x3_forward.5} parent=11 // pred_region
        _
      $region24: #{dsconv3x3_forward.5} parent=11 // pred_fallthru
        _
      // Predicated region
      $region25: #{dsconv3x3_forward.5} parent=11 // pred_check
        %p215 = pneg %p123
      $region26: #{dsconv3x3_forward.5} parent=11 // pred_check_branch
        %217 = sbr.rel (%p215) target = $region28
      $region27: #{dsconv3x3_forward.5} parent=11 // pred_region
        _
      $region28: #{dsconv3x3_forward.5} parent=11 // pred_fallthru
        _
      // Predicated region
      $region29: #{dsconv3x3_forward.5} parent=11 // pred_check
        %p218 = pneg %p144
      $region30: #{dsconv3x3_forward.5} parent=11 // pred_check_branch
        %220 = sbr.rel (%p218) target = $region32
      $region31: #{dsconv3x3_forward.5} parent=11 // pred_region
        _
      $region32: #{dsconv3x3_forward.5} parent=11 // pred_fallthru
        _
      // Predicated region
      $region33: #{dsconv3x3_forward.5} parent=11 // pred_check
        %p221 = pneg %p165
      $region34: #{dsconv3x3_forward.5} parent=11 // pred_check_branch
        %223 = sbr.rel (%p221) target = $region36
      $region35: #{dsconv3x3_forward.5} parent=11 // pred_region
        _
      $region36: #{dsconv3x3_forward.5} parent=11 // pred_fallthru
        _
    $region12: #{dsconv3x3_forward.5} parent=5 // pred_fallthru
      _
    %p224 = scmp.lt.s32.totalorder %s13, 2
    // Predicated region
    $region37: #{dsconv3x3_forward.5} parent=5 // pred_check
      %p225 = pneg %p224
    $region38: #{dsconv3x3_forward.5} parent=5 // pred_check_branch
      %227 = sbr.rel (%p225) target = $region40
    $region39: #{dsconv3x3_forward.5} parent=5 // pred_region
      // Predicated region
      $region41: #{dsconv3x3_forward.5} parent=39 // pred_check
        %p228 = pneg %p33
      $region42: #{dsconv3x3_forward.5} parent=39 // pred_check_branch
        %230 = sbr.rel (%p228) target = $region44
      $region43: #{dsconv3x3_forward.5} parent=39 // pred_region
        %p231 = scmp.lt.s32.totalorder %s13, 1
        %s232 = scalar_select %p231, %s13, 1
        %s233 = smul.addr %s232, 4
        %s234 = smul.addr %s233, 4
        %s235 = scalar_lea.vmem %s0, %s234
      $region44: #{dsconv3x3_forward.5} parent=39 // pred_fallthru
        _
    $region40: #{dsconv3x3_forward.5} parent=5 // pred_fallthru
      _
    %p236 = scmp.le.s32.totalorder 1, %s13
    %p237 = scmp.lt.s32.totalorder %s13, 3
    %p238 = pnand %p236, %p237
    %p239 = pneg %p238
    // Predicated region
    $region45: #{dsconv3x3_forward.5} parent=5 // pred_check
      _
    $region46: #{dsconv3x3_forward.5} parent=5 // pred_check_branch
      %241 = sbr.rel (%p238) target = $region48
    $region47: #{dsconv3x3_forward.5} parent=5 // pred_region
      %s242 = ssub.s32 %s13, 1
      %p243 = scmp.lt.s32.totalorder %s18, 1
      %s244 = scalar_select %p243, %s18, 1
      %s245 = smul.addr %s244, 4
      %s246 = smul.addr %s245, 4
      %s247 = scalar_lea.vmem %s0, %s246
      %p248 = pneg %p39
      %p249 = pneg %p36
      %p250 = pneg %p60
      %p251 = pneg %p57
      %p252 = pneg %p81
      %p253 = pneg %p78
      %p254 = pneg %p102
      %p255 = pneg %p99
      %p256 = pneg %p123
      %p257 = pneg %p120
      %p258 = pneg %p144
      %p259 = pneg %p141
      %p260 = pneg %p165
      %p261 = pneg %p162
      %p262 = pneg %p191
      %p263 = pneg %p188
      %p264 = scmp.lt.s32.totalorder %s18, 1
      %s265 = scalar_select %p264, %s18, 1
      %s266 = smul.addr %s265, 3
      %s267 = smul.addr %s266, 8
      %s268 = scalar_lea.vmem %s7, %s267
      %p269 = scmp.lt.s32.totalorder %s18, 1
      %s270 = scalar_select %p269, %s18, 1
      %s271 = smul.addr %s270, 4
      %s272 = smul.addr %s271, 4
      %s273 = scalar_lea.vmem %s0, %s272
      %p274 = scmp.lt.s32.totalorder %s18, 1
      %s275 = scalar_select %p274, %s18, 1
      %s276 = smul.addr %s275, 3
      %s277 = smul.addr %s276, 8
      %s278 = scalar_lea.vmem %s7, %s277
      %v279 = vld [vmem:[%s273] sm:$0xff]
      %v280 = vld [vmem:[%s273 + $0x8] sm:$0xff]
      %v281 = vld [vmem:[%s1] sm:$0xf]
      %283 = vset.pattern.permute.xlu0 0
      %284 = vperm.xlu0 %283, %v281
      %v285 = vpop.permute.xlu0 %284
      %v287 = vunpack.c.l.s4 839922192
      %v288 = vunpack.c.0.s8 %v287
      %v289 = vperm.slane %v285, %v288
      %v291 = vmul.f32 %v279, %v289
      %v292 = vmul.f32 %v280, %v289
      %v293 = vadd.f32 %v291, 0.0
      %v294 = vadd.f32 %v292, 0.0
      %295 = vset.pattern.permute.xlu0 1
      %296 = vperm.xlu0 %295, %v281
      %v297 = vpop.permute.xlu0 %296
      %v299 = vunpack.c.l.s4 839922192
      %v300 = vunpack.c.0.s8 %v299
      %v301 = vperm.slane %v297, %v300
      %v303 = vmul.f32 %v279, %v301
      %v304 = vmul.f32 %v280, %v301
      %307 = vrot.lane.b32.xlu0 %v303, 127
      %v308 = vpop.permute.xlu0 %307
      %309 = vrot.lane.b32.xlu0 %v304, 127
      %v310 = vpop.permute.xlu0 %309
      %v311 = vrot.slane %v308, 4
      %v312 = vrot.slane %v310, 4
      %vm313 = vcmask 1043456
      %v314 = vsel %vm313, %v311, %v312
      %vm315 = vcmask 1039360
      %v316 = vsel %vm315, %v308, %v314
      %v317 = vsel %vm315, %v310, %v312
      %v320 = vadd.f32 %v293, %v316
      %v321 = vadd.f32 %v294, %v317
      %322 = vset.pattern.permute.xlu0 2
      %323 = vperm.xlu0 %322, %v281
      %v324 = vpop.permute.xlu0 %323
      %v326 = vunpack.c.l.s4 839922192
      %v327 = vunpack.c.0.s8 %v326
      %v328 = vperm.slane %v324, %v327
      %v330 = vmul.f32 %v279, %v328
      %v331 = vmul.f32 %v280, %v328
      %334 = vrot.lane.b32.xlu0 %v330, 126
      %v335 = vpop.permute.xlu0 %334
      %336 = vrot.lane.b32.xlu0 %v331, 126
      %v337 = vpop.permute.xlu0 %336
      %v338 = vrot.slane %v335, 4
      %v339 = vrot.slane %v337, 4
      %v340 = vsel %vm313, %v338, %v339
      %vm341 = vcmask 1031168
      %v342 = vsel %vm341, %v335, %v340
      %v343 = vsel %vm341, %v337, %v339
      %v346 = vadd.f32 %v320, %v342
      %v347 = vadd.f32 %v321, %v343
      %348 = vset.pattern.permute.xlu0 3
      %349 = vperm.xlu0 %348, %v281
      %v350 = vpop.permute.xlu0 %349
      %v352 = vunpack.c.l.s4 839922192
      %v353 = vunpack.c.0.s8 %v352
      %v354 = vperm.slane %v350, %v353
      %v356 = vmul.f32 %v279, %v354
      %v357 = vmul.f32 %v280, %v354
      %360 = vrot.lane.b32.xlu0 %v356, 110
      %v361 = vpop.permute.xlu0 %360
      %362 = vrot.lane.b32.xlu0 %v357, 110
      %v363 = vpop.permute.xlu0 %362
      %v364 = vrot.slane %v361, 4
      %v365 = vrot.slane %v363, 4
      %v366 = vsel %vm313, %v364, %v365
      %vm367 = vcmask 900096
      %v368 = vsel %vm367, %v361, %v366
      %v369 = vsel %vm367, %v363, %v365
      %v372 = vadd.f32 %v346, %v368
      %v373 = vadd.f32 %v347, %v369
      %374 = vset.pattern.permute.xlu0 4
      %375 = vperm.xlu0 %374, %v281
      %v376 = vpop.permute.xlu0 %375
      %v378 = vunpack.c.l.s4 839922192
      %v379 = vunpack.c.0.s8 %v378
      %v380 = vperm.slane %v376, %v379
      %v382 = vmul.f32 %v279, %v380
      %v383 = vmul.f32 %v280, %v380
      %386 = vrot.lane.b32.xlu0 %v382, 109
      %v387 = vpop.permute.xlu0 %386
      %388 = vrot.lane.b32.xlu0 %v383, 109
      %v389 = vpop.permute.xlu0 %388
      %v390 = vrot.slane %v387, 4
      %v391 = vrot.slane %v389, 4
      %v392 = vsel %vm313, %v390, %v391
      %vm393 = vcmask 891904
      %v394 = vsel %vm393, %v387, %v392
      %v395 = vsel %vm393, %v389, %v391
      %v398 = vadd.f32 %v372, %v394
      %v399 = vadd.f32 %v373, %v395
      %400 = vset.pattern.permute.xlu0 5
      %401 = vperm.xlu0 %400, %v281
      %v402 = vpop.permute.xlu0 %401
      %v404 = vunpack.c.l.s4 839922192
      %v405 = vunpack.c.0.s8 %v404
      %v406 = vperm.slane %v402, %v405
      %v408 = vmul.f32 %v279, %v406
      %v409 = vmul.f32 %v280, %v406
      %412 = vrot.lane.b32.xlu0 %v408, 108
      %v413 = vpop.permute.xlu0 %412
      %414 = vrot.lane.b32.xlu0 %v409, 108
      %v415 = vpop.permute.xlu0 %414
      %v416 = vrot.slane %v413, 4
      %v417 = vrot.slane %v415, 4
      %v418 = vsel %vm313, %v416, %v417
      %vm419 = vcmask 883712
      %v420 = vsel %vm419, %v413, %v418
      %v421 = vsel %vm419, %v415, %v417
      %v424 = vadd.f32 %v398, %v420
      %v425 = vadd.f32 %v399, %v421
      %426 = vset.pattern.permute.xlu0 6
      %427 = vperm.xlu0 %426, %v281
      %v428 = vpop.permute.xlu0 %427
      %v430 = vunpack.c.l.s4 839922192
      %v431 = vunpack.c.0.s8 %v430
      %v432 = vperm.slane %v428, %v431
      %v434 = vmul.f32 %v279, %v432
      %v435 = vmul.f32 %v280, %v432
      %438 = vrot.lane.b32.xlu0 %v434, 92
      %v439 = vpop.permute.xlu0 %438
      %440 = vrot.lane.b32.xlu0 %v435, 92
      %v441 = vpop.permute.xlu0 %440
      %v442 = vrot.slane %v439, 4
      %v443 = vrot.slane %v441, 4
      %v444 = vsel %vm313, %v442, %v443
      %vm445 = vcmask 752640
      %v446 = vsel %vm445, %v439, %v444
      %v447 = vsel %vm445, %v441, %v443
      %v450 = vadd.f32 %v424, %v446
      %v451 = vadd.f32 %v425, %v447
      %452 = vset.pattern.permute.xlu0 7
      %453 = vperm.xlu0 %452, %v281
      %v454 = vpop.permute.xlu0 %453
      %v456 = vunpack.c.l.s4 839922192
      %v457 = vunpack.c.0.s8 %v456
      %v458 = vperm.slane %v454, %v457
      %v460 = vmul.f32 %v279, %v458
      %v461 = vmul.f32 %v280, %v458
      %464 = vrot.lane.b32.xlu0 %v460, 91
      %v465 = vpop.permute.xlu0 %464
      %466 = vrot.lane.b32.xlu0 %v461, 91
      %v467 = vpop.permute.xlu0 %466
      %v468 = vrot.slane %v465, 4
      %v469 = vrot.slane %v467, 4
      %v470 = vsel %vm313, %v468, %v469
      %vm471 = vcmask 744448
      %v472 = vsel %vm471, %v465, %v470
      %v473 = vsel %vm471, %v467, %v469
      %v476 = vadd.f32 %v450, %v472
      %v477 = vadd.f32 %v451, %v473
      %478 = vset.pattern.permute.xlu0 8
      %479 = vperm.xlu0 %478, %v281
      %v480 = vpop.permute.xlu0 %479
      %v482 = vunpack.c.l.s4 839922192
      %v483 = vunpack.c.0.s8 %v482
      %v484 = vperm.slane %v480, %v483
      %v486 = vmul.f32 %v279, %v484
      %v487 = vmul.f32 %v280, %v484
      %490 = vrot.lane.b32.xlu0 %v486, 90
      %v491 = vpop.permute.xlu0 %490
      %492 = vrot.lane.b32.xlu0 %v487, 90
      %v493 = vpop.permute.xlu0 %492
      %v494 = vrot.slane %v491, 4
      %v495 = vrot.slane %v493, 4
      %v496 = vsel %vm313, %v494, %v495
      %vm497 = vcmask 736256
      %v498 = vsel %vm497, %v491, %v496
      %v499 = vsel %vm497, %v493, %v495
      %v502 = vadd.f32 %v476, %v498
      %v503 = vadd.f32 %v477, %v499
      %v504 = vld [vmem:[%s2] sm:$0xf]
      %506 = vset.pattern.permute.xlu0 0
      %507 = vperm.xlu0 %506, %v504
      %v508 = vpop.permute.xlu0 %507
      %v510 = vunpack.c.l.s4 839922192
      %v511 = vunpack.c.0.s8 %v510
      %v512 = vperm.slane %v508, %v511
      %v514 = vmul.f32 %v502, %v512
      %v515 = vmul.f32 %v503, %v512
      %v516 = vld [vmem:[%s3] sm:$0xf]
      %518 = vset.pattern.permute.xlu0 0
      %519 = vperm.xlu0 %518, %v516
      %v520 = vpop.permute.xlu0 %519
      %v522 = vunpack.c.l.s4 839922192
      %v523 = vunpack.c.0.s8 %v522
      %v524 = vperm.slane %v520, %v523
      %v526 = vadd.f32 %v514, %v524
      %v527 = vadd.f32 %v515, %v524
      %v528 = vmax.f32 %v526, 0.0
      %v529 = vmax.f32 %v527, 0.0
      %v530 = vld [vmem:[%s4] sm:$0xff]
      %532 = vset.pattern.permute.xlu0 0
      %533 = vperm.xlu0 %532, %v530
      %v534 = vpop.permute.xlu0 %533
      %v538 = vperm.slane %v528, 0
      %v539 = vperm.slane %v528, 4
      %v540 = vperm.slane %v529, 0
      %v544 = vperm.slane %v538, 0
      %v545 = vperm.slane %v539, 0
      %v546 = vperm.slane %v540, 0
      %v547 = vmul.f32 %v534, %v544
      %v548 = vmul.f32 %v534, %v545
      %v549 = vmul.f32 %v534, %v546
      %v550 = vadd.f32 %v547, 0.0
      %v551 = vadd.f32 %v548, 0.0
      %v552 = vadd.f32 %v549, 0.0
      %553 = vset.pattern.permute.xlu0 1
      %554 = vperm.xlu0 %553, %v530
      %v555 = vpop.permute.xlu0 %554
      %v557 = vperm.slane %v528, 1
      %v558 = vperm.slane %v528, 5
      %v559 = vperm.slane %v529, 1
      %v563 = vperm.slane %v557, 1
      %v564 = vperm.slane %v558, 1
      %v565 = vperm.slane %v559, 1
      %v566 = vmul.f32 %v555, %v563
      %v567 = vmul.f32 %v555, %v564
      %v568 = vmul.f32 %v555, %v565
      %v569 = vadd.f32 %v550, %v566
      %v570 = vadd.f32 %v551, %v567
      %v571 = vadd.f32 %v552, %v568
      %572 = vset.pattern.permute.xlu0 2
      %573 = vperm.xlu0 %572, %v530
      %v574 = vpop.permute.xlu0 %573
      %v576 = vperm.slane %v528, 2
      %v577 = vperm.slane %v528, 6
      %v578 = vperm.slane %v529, 2
      %v582 = vperm.slane %v576, 2
      %v583 = vperm.slane %v577, 2
      %v584 = vperm.slane %v578, 2
      %v585 = vmul.f32 %v574, %v582
      %v586 = vmul.f32 %v574, %v583
      %v587 = vmul.f32 %v574, %v584
      %v588 = vadd.f32 %v569, %v585
      %v589 = vadd.f32 %v570, %v586
      %v590 = vadd.f32 %v571, %v587
      %591 = vset.pattern.permute.xlu0 3
      %592 = vperm.xlu0 %591, %v530
      %v593 = vpop.permute.xlu0 %592
      %v595 = vperm.slane %v528, 3
      %v596 = vperm.slane %v528, 7
      %v597 = vperm.slane %v529, 3
      %v601 = vperm.slane %v595, 3
      %v602 = vperm.slane %v596, 3
      %v603 = vperm.slane %v597, 3
      %v604 = vmul.f32 %v593, %v601
      %v605 = vmul.f32 %v593, %v602
      %v606 = vmul.f32 %v593, %v603
      %v607 = vadd.f32 %v588, %v604
      %v608 = vadd.f32 %v589, %v605
      %v609 = vadd.f32 %v590, %v606
      %v610 = vld [vmem:[%s5] sm:$0xff]
      %612 = vset.pattern.permute.xlu0 0
      %613 = vperm.xlu0 %612, %v610
      %v614 = vpop.permute.xlu0 %613
      %v616 = vmul.f32 %v607, %v614
      %v617 = vmul.f32 %v608, %v614
      %v618 = vmul.f32 %v609, %v614
      %v619 = vld [vmem:[%s6] sm:$0xff]
      %621 = vset.pattern.permute.xlu0 0
      %622 = vperm.xlu0 %621, %v619
      %v623 = vpop.permute.xlu0 %622
      %v625 = vadd.f32 %v616, %v623
      %v626 = vadd.f32 %v617, %v623
      %v627 = vadd.f32 %v618, %v623
      %v628 = vmax.f32 %v625, 0.0
      %v629 = vmax.f32 %v626, 0.0
      %v630 = vmax.f32 %v627, 0.0
      %631 = vst [vmem:[%s278] sm:$0xff] %v628
      %632 = vst [vmem:[%s278 + $0x8] sm:$0xff] %v629
      %633 = vst [vmem:[%s278 + $0x10] sm:$0xff] %v630
      %p634 = scmp.lt.s32.totalorder %s18, 1
      %s635 = scalar_select %p634, %s18, 1
      %s636 = smul.addr %s635, 3
      %s637 = smul.addr %s636, 8
      %s638 = scalar_lea.vmem %s7, %s637
      // Predicated region
      $region49: #{dsconv3x3_forward.5} parent=47 // pred_check
        %p639 = pneg %p188
      $region50: #{dsconv3x3_forward.5} parent=47 // pred_check_branch
        %641 = sbr.rel (%p639) target = $region52
      $region51: #{dsconv3x3_forward.5} parent=47 // pred_region
        _
      $region52: #{dsconv3x3_forward.5} parent=47 // pred_fallthru
        _
    $region48: #{dsconv3x3_forward.5} parent=5 // pred_fallthru
      _
    %p642 = scmp.le.s32.totalorder 2, %s13
    // Predicated region
    $region53: #{dsconv3x3_forward.5} parent=5 // pred_check
      %p643 = pneg %p642
    $region54: #{dsconv3x3_forward.5} parent=5 // pred_check_branch
      %645 = sbr.rel (%p643) target = $region56
    $region55: #{dsconv3x3_forward.5} parent=5 // pred_region
      %s646 = ssub.s32 %s13, 2
      // Predicated region
      $region57: #{dsconv3x3_forward.5} parent=55 // pred_check
        %p647 = pneg %p194
      $region58: #{dsconv3x3_forward.5} parent=55 // pred_check_branch
        %649 = sbr.rel (%p647) target = $region60
      $region59: #{dsconv3x3_forward.5} parent=55 // pred_region
        %p650 = scmp.lt.s32.totalorder %s19, 1
        %s651 = scalar_select %p650, %s19, 1
        %s652 = smul.addr %s651, 3
        %s653 = smul.addr %s652, 8
        %s654 = scalar_lea.vmem %s7, %s653
      $region60: #{dsconv3x3_forward.5} parent=55 // pred_fallthru
        _
    $region56: #{dsconv3x3_forward.5} parent=5 // pred_fallthru
      _
  $region6: #{dsconv3x3_forward.5} parent=0 // loop_footer
    %s17 = sadd.s32 1, %s13
  $region7: #{dsconv3x3_forward.5} parent=0 // loop_footer_branch
    %12 = sbr.rel target = $region3
  $region8: #{dsconv3x3_forward.5} parent=0 // loop_exit
    _

</llo_original>
